<compile_context>
chip_gen: v7x
topology: tpu7x:2x2x1
jax: 0.10.0
libtpu: 0.0.40
codegen_flags: <defaults>
</compile_context>

<pallas_src>
import functools

import jax
import jax.numpy as jnp
from jax import lax
from jax.experimental import pallas as pl
from jax.experimental.pallas import tpu as pltpu


def _round_up(n, m):
    return ((n + m - 1) // m) * m


def _lstm_linear_kernel(x_ref, wih_ref, whh_ref, b_ref, wout_ref, bout_ref,
                        out_ref, xp_ref, *, hidden_size, unroll):
    """LSTM recurrence over time + final Linear, for one batch tile.

    x_ref   : [T, Bt]      time-major input (input_size == 1 -> scalar per step)
    wih_ref : [1, 4H]      input->gates weights (transposed)
    whh_ref : [H, 4H]      hidden->gates weights (transposed)
    b_ref   : [1, 4H]      combined bias (b_ih + b_hh)
    wout_ref: [H, H]       output Linear weight (transposed)
    bout_ref: [1, H]       output Linear bias
    out_ref : [Bt, H]      result for this batch tile
    xp_ref  : [T, Bt, 4H]  VMEM scratch: precomputed, pre-scaled input projection
    """
    T, Bt = x_ref.shape
    H = hidden_size

    # Gate scale for the tanh-identity sigmoid: 0.5 for i/f/o columns, 1.0 for g.
    col = lax.broadcasted_iota(jnp.int32, (1, 4 * H), 1)
    gate_scale = jnp.where((col >= 2 * H) & (col < 3 * H),
                           jnp.float32(1.0), jnp.float32(0.5))          # [1, 4H]

    # Hoisted (outside the serial time loop): pre-scaled hidden weights (bf16)
    # and the full input projection + bias, stored time-major in VMEM scratch.
    whh_s = (whh_ref[...] * gate_scale).astype(jnp.bfloat16)            # [H, 4H]
    x_tb = x_ref[...]                                                   # [T, Bt]
    xp_ref[...] = ((x_tb[:, :, None] * wih_ref[...][None, :, :]
                    + b_ref[...][None, :, :])
                   * gate_scale[None, :, :])                            # [T,Bt,4H]

    def step(t, carry):
        h, c = carry                                                    # [Bt, H] f32
        # gates already include input projection, bias and the 0.5 pre-scale.
        gates = xp_ref[t] + jnp.dot(h.astype(jnp.bfloat16), whh_s,
                                    preferred_element_type=jnp.float32)  # [Bt,4H]
        tg = jnp.tanh(gates)                                            # single EUP pass
        i = 0.5 * (tg[:, 0:H] + 1.0)          # sigmoid via tanh identity
        f = 0.5 * (tg[:, H:2 * H] + 1.0)
        g = tg[:, 2 * H:3 * H]
        o = 0.5 * (tg[:, 3 * H:4 * H] + 1.0)
        c_new = f * c + i * g
        h_new = o * jnp.tanh(c_new)
        return (h_new, c_new)

    h0 = jnp.zeros((Bt, H), jnp.float32)
    c0 = jnp.zeros((Bt, H), jnp.float32)
    h_final, _ = lax.fori_loop(0, T, step, (h0, c0), unroll=unroll)

    # Final Linear (once, f32): hn @ W_out^T + b_out  -> lane-dense [Bt, H] store.
    out_ref[...] = (jnp.dot(h_final, wout_ref[...],
                            preferred_element_type=jnp.float32)
                    + bout_ref[...])


def eeg_bilstm_forward(x, params):
    """x: [B, T] float32. params: dict of pre-transposed weights."""
    B, T = x.shape
    H = params["w_hh_T"].shape[0]
    FH = 4 * H

    # Pad batch to a dense sublane tile; for large batches tile at 128 so the
    # "parallel" grid axis lets v7x's two TensorCores split the work.
    if B <= 128:
        b_pad = _round_up(max(B, 8), 8)
        b_tile = b_pad
    else:
        b_pad = _round_up(B, 128)
        b_tile = 128
    n_tiles = b_pad // b_tile

    # Time-major, batch-padded input: [T, B_pad] (padded rows are zeros -> harmless).
    x_tb = jnp.pad(jnp.transpose(x).astype(jnp.float32),
                   ((0, 0), (0, b_pad - B)))

    kernel = functools.partial(_lstm_linear_kernel, hidden_size=H,
                               unroll=True if T <= 32 else 8)

    cost = pl.CostEstimate(
        flops=2 * T * b_pad * H * FH + 2 * b_pad * H * H,
        transcendentals=5 * T * b_pad * H,
        bytes_accessed=4 * (T * b_pad + FH + H * FH + FH + H * H + H
                            + b_pad * H),
    )

    out_pad = pl.pallas_call(
        kernel,
        out_shape=jax.ShapeDtypeStruct((b_pad, H), jnp.float32),
        grid_spec=pltpu.PrefetchScalarGridSpec(
            num_scalar_prefetch=0,
            grid=(n_tiles,),
            in_specs=[
                pl.BlockSpec((T, b_tile), lambda i: (0, i)),   # x, time-major
                pl.BlockSpec((1, FH), lambda i: (0, 0)),       # w_ih_T (replicated)
                pl.BlockSpec((H, FH), lambda i: (0, 0)),       # w_hh_T (replicated)
                pl.BlockSpec((1, FH), lambda i: (0, 0)),       # b_gates
                pl.BlockSpec((H, H), lambda i: (0, 0)),        # w_out_T
                pl.BlockSpec((1, H), lambda i: (0, 0)),        # b_out
            ],
            out_specs=pl.BlockSpec((b_tile, H), lambda i: (i, 0)),
            scratch_shapes=[pltpu.VMEM((T, b_tile, FH), jnp.float32)],
        ),
        compiler_params=pltpu.CompilerParams(
            dimension_semantics=("parallel",)),
        cost_estimate=cost,
    )(x_tb, params["w_ih_T"], params["w_hh_T"], params["b_gates"],
      params["w_out_T"], params["b_out"])

    return out_pad[:B]


def init_params(key, hidden_size):
    """Deterministic xavier-uniform weights, zero biases (matches init_weights)."""
    H = hidden_size
    k1, k2, k3 = jax.random.split(key, 3)

    def xavier(k, shape):            # shape = (fan_out, fan_in) like PyTorch
        fan_out, fan_in = shape
        bound = (6.0 / (fan_in + fan_out)) ** 0.5
        return jax.random.uniform(k, shape, jnp.float32, -bound, bound)

    w_ih = xavier(k1, (4 * H, 1))        # LSTM weight_ih_l0
    w_hh = xavier(k2, (4 * H, H))        # LSTM weight_hh_l0
    w_out = xavier(k3, (H, H))           # Linear weight
    # biases zero-initialized; b_gates = b_ih + b_hh = 0
    return {
        "w_ih_T": jnp.transpose(w_ih),             # [1, 4H]
        "w_hh_T": jnp.transpose(w_hh),             # [H, 4H]
        "b_gates": jnp.zeros((1, 4 * H), jnp.float32),
        "w_out_T": jnp.transpose(w_out),           # [H, H]
        "b_out": jnp.zeros((1, H), jnp.float32),
    }


def reference_forward(x, params):
    """Pure-JAX f32 reference of the same forward pass (standard sigmoid)."""
    B, T = x.shape
    H = params["w_hh_T"].shape[0]
    h = jnp.zeros((B, H), jnp.float32)
    c = jnp.zeros((B, H), jnp.float32)
    for t in range(T):
        x_t = x[:, t:t + 1]
        gates = x_t * params["w_ih_T"] + h @ params["w_hh_T"] + params["b_gates"]
        i = jax.nn.sigmoid(gates[:, 0:H])
        f = jax.nn.sigmoid(gates[:, H:2 * H])
        g = jnp.tanh(gates[:, 2 * H:3 * H])
        o = jax.nn.sigmoid(gates[:, 3 * H:4 * H])
        c = f * c + i * g
        h = o * jnp.tanh(c)
    return h @ params["w_out_T"] + params["b_out"]


if __name__ == "__main__":
    # Small deterministic test: batch=2, time_steps=8, hidden=128 (module default).
    B, T, H = 2, 8, 128
    key = jax.random.PRNGKey(0)
    kx, kp = jax.random.split(key)

    x = jax.random.normal(kx, (B, T), jnp.float32)   # [batch, time_steps]
    params = init_params(kp, H)

    out = eeg_bilstm_forward(x, params)
    out = jax.block_until_ready(out)

    ref = reference_forward(x, params)
    assert out.shape == (B, H)
    # bf16 recurrence matmul (f32 accum) -> allow a slightly looser tolerance.
    max_err = float(jnp.max(jnp.abs(out - ref)))
    assert max_err < 1e-2, f"max abs err {max_err}"

    print("KERNEL_OK")
</pallas_src>

<mosaic_0001>
module attributes {stable_mosaic.version = 11 : i64} {
  func.func @_lstm_linear_kernel(%arg0: i32, %arg1: memref<8x8xf32, #tpu.memory_space<vmem>>, %arg2: memref<1x512xf32, #tpu.memory_space<vmem>>, %arg3: memref<128x512xf32, #tpu.memory_space<vmem>>, %arg4: memref<1x512xf32, #tpu.memory_space<vmem>>, %arg5: memref<128x128xf32, #tpu.memory_space<vmem>>, %arg6: memref<1x128xf32, #tpu.memory_space<vmem>>, %arg7: memref<8x128xf32, #tpu.memory_space<vmem>>, %arg8: memref<8x8x512xf32, #tpu.memory_space<vmem>>) attributes {dimension_semantics = [#tpu.dimension_semantics<parallel>], iteration_bounds = array<i64: 1>, scalar_prefetch = 0 : i64, scratch_operands = 1 : i64, tpu.core_type = #tpu.core_type<tc>, window_params = [{transform_indices = @transform_0, window_bounds = array<i64: 8, 8>}, {pipeline_mode = #tpu.pipeline_mode<synchronous>, transform_indices = @transform_1, window_bounds = array<i64: 1, 512>}, {pipeline_mode = #tpu.pipeline_mode<synchronous>, transform_indices = @transform_2, window_bounds = array<i64: 128, 512>}, {pipeline_mode = #tpu.pipeline_mode<synchronous>, transform_indices = @transform_3, window_bounds = array<i64: 1, 512>}, {pipeline_mode = #tpu.pipeline_mode<synchronous>, transform_indices = @transform_4, window_bounds = array<i64: 128, 128>}, {pipeline_mode = #tpu.pipeline_mode<synchronous>, transform_indices = @transform_5, window_bounds = array<i64: 1, 128>}, {transform_indices = @transform_6, window_bounds = array<i64: 8, 128>}]} {
    %0 = tpu.iota {dimensions = array<i32: 1>} : vector<1x512xi32>
    %c256_i32 = arith.constant 256 : i32
    %1 = vector.broadcast %c256_i32 : i32 to vector<1x512xi32>
    %2 = arith.cmpi sge, %0, %1 : vector<1x512xi32>
    %c384_i32 = arith.constant 384 : i32
    %3 = vector.broadcast %c384_i32 : i32 to vector<1x512xi32>
    %4 = arith.cmpi slt, %0, %3 : vector<1x512xi32>
    %5 = arith.andi %2, %4 : vector<1x512xi1>
    %cst = arith.constant 1.000000e+00 : f32
    %cst_0 = arith.constant 5.000000e-01 : f32
    %6 = vector.broadcast %cst : f32 to vector<1x512xf32>
    %7 = vector.broadcast %cst_0 : f32 to vector<1x512xf32>
    %8 = arith.select %5, %6, %7 : vector<1x512xi1>, vector<1x512xf32>
    %c0 = arith.constant 0 : index
    %c0_1 = arith.constant 0 : index
    %9 = vector.load %arg3[%c0, %c0_1] : memref<128x512xf32, #tpu.memory_space<vmem>>, vector<128x512xf32>
    %10 = vector.broadcast %8 : vector<1x512xf32> to vector<128x512xf32>
    %11 = arith.mulf %9, %10 : vector<128x512xf32>
    %12 = arith.truncf %11 : vector<128x512xf32> to vector<128x512xbf16>
    %c0_2 = arith.constant 0 : index
    %c0_3 = arith.constant 0 : index
    %13 = vector.load %arg1[%c0_2, %c0_3] : memref<8x8xf32, #tpu.memory_space<vmem>>, vector<8x8xf32>
    %14 = vector.shape_cast %13 : vector<8x8xf32> to vector<8x8x1xf32>
    %c0_4 = arith.constant 0 : index
    %c0_5 = arith.constant 0 : index
    %15 = vector.load %arg2[%c0_4, %c0_5] : memref<1x512xf32, #tpu.memory_space<vmem>>, vector<1x512xf32>
    %16 = vector.shape_cast %15 : vector<1x512xf32> to vector<1x1x512xf32>
    %17 = vector.broadcast %14 : vector<8x8x1xf32> to vector<8x8x512xf32>
    %18 = vector.broadcast %16 : vector<1x1x512xf32> to vector<8x8x512xf32>
    %19 = arith.mulf %17, %18 : vector<8x8x512xf32>
    %c0_6 = arith.constant 0 : index
    %c0_7 = arith.constant 0 : index
    %20 = vector.load %arg4[%c0_6, %c0_7] : memref<1x512xf32, #tpu.memory_space<vmem>>, vector<1x512xf32>
    %21 = vector.shape_cast %20 : vector<1x512xf32> to vector<1x1x512xf32>
    %22 = vector.broadcast %21 : vector<1x1x512xf32> to vector<8x8x512xf32>
    %23 = arith.addf %19, %22 : vector<8x8x512xf32>
    %24 = vector.shape_cast %8 : vector<1x512xf32> to vector<1x1x512xf32>
    %25 = vector.broadcast %24 : vector<1x1x512xf32> to vector<8x8x512xf32>
    %26 = arith.mulf %23, %25 : vector<8x8x512xf32>
    %c0_8 = arith.constant 0 : index
    %c0_9 = arith.constant 0 : index
    %c0_10 = arith.constant 0 : index
    %27 = vector.load %arg8[%c0_8, %c0_9, %c0_10] : memref<8x8x512xf32, #tpu.memory_space<vmem>>, vector<8x8x512xf32>
    tpu.vector_store %arg8[%c0_8, %c0_9, %c0_10], %26 {strides = array<i32>} : memref<8x8x512xf32, #tpu.memory_space<vmem>>, vector<8x8x512xf32>,
    %cst_11 = arith.constant 0.000000e+00 : f32
    %28 = vector.broadcast %cst_11 : f32 to vector<8x128xf32>
    %cst_12 = arith.constant 0.000000e+00 : f32
    %29 = vector.broadcast %cst_12 : f32 to vector<8x128xf32>
    %c0_i32 = arith.constant 0 : i32
    %30 = arith.index_cast %c0_i32 : i32 to index
    %c0_13 = arith.constant 0 : index
    %c0_14 = arith.constant 0 : index
    %31 = vector.load %arg8[%30, %c0_13, %c0_14] : memref<8x8x512xf32, #tpu.memory_space<vmem>>, vector<1x8x512xf32>
    %32 = vector.shape_cast %31 : vector<1x8x512xf32> to vector<8x512xf32>
    %33 = arith.truncf %28 : vector<8x128xf32> to vector<8x128xbf16>
    %cst_15 = arith.constant dense<0.000000e+00> : vector<8x512xf32>
    %34 = tpu.matmul %33, %12, %cst_15 {dimension_numbers = #tpu.dot_dimension_numbers<[1], [0], [0], [1], [0, 0, 1, 1], [], []>} : vector<8x128xbf16>, vector<128x512xbf16>, vector<8x512xf32> -> vector<8x512xf32>
    %35 = arith.addf %32, %34 : vector<8x512xf32>
    %36 = math.tanh %35 : vector<8x512xf32>
    %37 = vector.extract_strided_slice %36 {offsets = [0, 0], sizes = [8, 128], strides = [1, 1]} : vector<8x512xf32> to vector<8x128xf32>
    %cst_16 = arith.constant 1.000000e+00 : f32
    %38 = vector.broadcast %cst_16 : f32 to vector<8x128xf32>
    %39 = arith.addf %37, %38 : vector<8x128xf32>
    %cst_17 = arith.constant 5.000000e-01 : f32
    %40 = vector.broadcast %cst_17 : f32 to vector<8x128xf32>
    %41 = arith.mulf %40, %39 : vector<8x128xf32>
    %42 = vector.extract_strided_slice %36 {offsets = [0, 128], sizes = [8, 128], strides = [1, 1]} : vector<8x512xf32> to vector<8x128xf32>
    %cst_18 = arith.constant 1.000000e+00 : f32
    %43 = vector.broadcast %cst_18 : f32 to vector<8x128xf32>
    %44 = arith.addf %42, %43 : vector<8x128xf32>
    %cst_19 = arith.constant 5.000000e-01 : f32
    %45 = vector.broadcast %cst_19 : f32 to vector<8x128xf32>
    %46 = arith.mulf %45, %44 : vector<8x128xf32>
    %47 = vector.extract_strided_slice %36 {offsets = [0, 256], sizes = [8, 128], strides = [1, 1]} : vector<8x512xf32> to vector<8x128xf32>
    %48 = vector.extract_strided_slice %36 {offsets = [0, 384], sizes = [8, 128], strides = [1, 1]} : vector<8x512xf32> to vector<8x128xf32>
    %cst_20 = arith.constant 1.000000e+00 : f32
    %49 = vector.broadcast %cst_20 : f32 to vector<8x128xf32>
    %50 = arith.addf %48, %49 : vector<8x128xf32>
    %cst_21 = arith.constant 5.000000e-01 : f32
    %51 = vector.broadcast %cst_21 : f32 to vector<8x128xf32>
    %52 = arith.mulf %51, %50 : vector<8x128xf32>
    %53 = arith.mulf %46, %29 : vector<8x128xf32>
    %54 = arith.mulf %41, %47 : vector<8x128xf32>
    %55 = arith.addf %53, %54 : vector<8x128xf32>
    %56 = math.tanh %55 : vector<8x128xf32>
    %57 = arith.mulf %52, %56 : vector<8x128xf32>
    %c1_i32 = arith.constant 1 : i32
    %58 = arith.index_cast %c1_i32 : i32 to index
    %c0_22 = arith.constant 0 : index
    %c0_23 = arith.constant 0 : index
    %59 = vector.load %arg8[%58, %c0_22, %c0_23] : memref<8x8x512xf32, #tpu.memory_space<vmem>>, vector<1x8x512xf32>
    %60 = vector.shape_cast %59 : vector<1x8x512xf32> to vector<8x512xf32>
    %61 = arith.truncf %57 : vector<8x128xf32> to vector<8x128xbf16>
    %cst_24 = arith.constant dense<0.000000e+00> : vector<8x512xf32>
    %62 = tpu.matmul %61, %12, %cst_24 {dimension_numbers = #tpu.dot_dimension_numbers<[1], [0], [0], [1], [0, 0, 1, 1], [], []>} : vector<8x128xbf16>, vector<128x512xbf16>, vector<8x512xf32> -> vector<8x512xf32>
    %63 = arith.addf %60, %62 : vector<8x512xf32>
    %64 = math.tanh %63 : vector<8x512xf32>
    %65 = vector.extract_strided_slice %64 {offsets = [0, 0], sizes = [8, 128], strides = [1, 1]} : vector<8x512xf32> to vector<8x128xf32>
    %cst_25 = arith.constant 1.000000e+00 : f32
    %66 = vector.broadcast %cst_25 : f32 to vector<8x128xf32>
    %67 = arith.addf %65, %66 : vector<8x128xf32>
    %cst_26 = arith.constant 5.000000e-01 : f32
    %68 = vector.broadcast %cst_26 : f32 to vector<8x128xf32>
    %69 = arith.mulf %68, %67 : vector<8x128xf32>
    %70 = vector.extract_strided_slice %64 {offsets = [0, 128], sizes = [8, 128], strides = [1, 1]} : vector<8x512xf32> to vector<8x128xf32>
    %cst_27 = arith.constant 1.000000e+00 : f32
    %71 = vector.broadcast %cst_27 : f32 to vector<8x128xf32>
    %72 = arith.addf %70, %71 : vector<8x128xf32>
    %cst_28 = arith.constant 5.000000e-01 : f32
    %73 = vector.broadcast %cst_28 : f32 to vector<8x128xf32>
    %74 = arith.mulf %73, %72 : vector<8x128xf32>
    %75 = vector.extract_strided_slice %64 {offsets = [0, 256], sizes = [8, 128], strides = [1, 1]} : vector<8x512xf32> to vector<8x128xf32>
    %76 = vector.extract_strided_slice %64 {offsets = [0, 384], sizes = [8, 128], strides = [1, 1]} : vector<8x512xf32> to vector<8x128xf32>
    %cst_29 = arith.constant 1.000000e+00 : f32
    %77 = vector.broadcast %cst_29 : f32 to vector<8x128xf32>
    %78 = arith.addf %76, %77 : vector<8x128xf32>
    %cst_30 = arith.constant 5.000000e-01 : f32
    %79 = vector.broadcast %cst_30 : f32 to vector<8x128xf32>
    %80 = arith.mulf %79, %78 : vector<8x128xf32>
    %81 = arith.mulf %74, %55 : vector<8x128xf32>
    %82 = arith.mulf %69, %75 : vector<8x128xf32>
    %83 = arith.addf %81, %82 : vector<8x128xf32>
    %84 = math.tanh %83 : vector<8x128xf32>
    %85 = arith.mulf %80, %84 : vector<8x128xf32>
    %c2_i32 = arith.constant 2 : i32
    %86 = arith.index_cast %c2_i32 : i32 to index
    %c0_31 = arith.constant 0 : index
    %c0_32 = arith.constant 0 : index
    %87 = vector.load %arg8[%86, %c0_31, %c0_32] : memref<8x8x512xf32, #tpu.memory_space<vmem>>, vector<1x8x512xf32>
    %88 = vector.shape_cast %87 : vector<1x8x512xf32> to vector<8x512xf32>
    %89 = arith.truncf %85 : vector<8x128xf32> to vector<8x128xbf16>
    %cst_33 = arith.constant dense<0.000000e+00> : vector<8x512xf32>
    %90 = tpu.matmul %89, %12, %cst_33 {dimension_numbers = #tpu.dot_dimension_numbers<[1], [0], [0], [1], [0, 0, 1, 1], [], []>} : vector<8x128xbf16>, vector<128x512xbf16>, vector<8x512xf32> -> vector<8x512xf32>
    %91 = arith.addf %88, %90 : vector<8x512xf32>
    %92 = math.tanh %91 : vector<8x512xf32>
    %93 = vector.extract_strided_slice %92 {offsets = [0, 0], sizes = [8, 128], strides = [1, 1]} : vector<8x512xf32> to vector<8x128xf32>
    %cst_34 = arith.constant 1.000000e+00 : f32
    %94 = vector.broadcast %cst_34 : f32 to vector<8x128xf32>
    %95 = arith.addf %93, %94 : vector<8x128xf32>
    %cst_35 = arith.constant 5.000000e-01 : f32
    %96 = vector.broadcast %cst_35 : f32 to vector<8x128xf32>
    %97 = arith.mulf %96, %95 : vector<8x128xf32>
    %98 = vector.extract_strided_slice %92 {offsets = [0, 128], sizes = [8, 128], strides = [1, 1]} : vector<8x512xf32> to vector<8x128xf32>
    %cst_36 = arith.constant 1.000000e+00 : f32
    %99 = vector.broadcast %cst_36 : f32 to vector<8x128xf32>
    %100 = arith.addf %98, %99 : vector<8x128xf32>
    %cst_37 = arith.constant 5.000000e-01 : f32
    %101 = vector.broadcast %cst_37 : f32 to vector<8x128xf32>
    %102 = arith.mulf %101, %100 : vector<8x128xf32>
    %103 = vector.extract_strided_slice %92 {offsets = [0, 256], sizes = [8, 128], strides = [1, 1]} : vector<8x512xf32> to vector<8x128xf32>
    %104 = vector.extract_strided_slice %92 {offsets = [0, 384], sizes = [8, 128], strides = [1, 1]} : vector<8x512xf32> to vector<8x128xf32>
    %cst_38 = arith.constant 1.000000e+00 : f32
    %105 = vector.broadcast %cst_38 : f32 to vector<8x128xf32>
    %106 = arith.addf %104, %105 : vector<8x128xf32>
    %cst_39 = arith.constant 5.000000e-01 : f32
    %107 = vector.broadcast %cst_39 : f32 to vector<8x128xf32>
    %108 = arith.mulf %107, %106 : vector<8x128xf32>
    %109 = arith.mulf %102, %83 : vector<8x128xf32>
    %110 = arith.mulf %97, %103 : vector<8x128xf32>
    %111 = arith.addf %109, %110 : vector<8x128xf32>
    %112 = math.tanh %111 : vector<8x128xf32>
    %113 = arith.mulf %108, %112 : vector<8x128xf32>
    %c3_i32 = arith.constant 3 : i32
    %114 = arith.index_cast %c3_i32 : i32 to index
    %c0_40 = arith.constant 0 : index
    %c0_41 = arith.constant 0 : index
    %115 = vector.load %arg8[%114, %c0_40, %c0_41] : memref<8x8x512xf32, #tpu.memory_space<vmem>>, vector<1x8x512xf32>
    %116 = vector.shape_cast %115 : vector<1x8x512xf32> to vector<8x512xf32>
    %117 = arith.truncf %113 : vector<8x128xf32> to vector<8x128xbf16>
    %cst_42 = arith.constant dense<0.000000e+00> : vector<8x512xf32>
    %118 = tpu.matmul %117, %12, %cst_42 {dimension_numbers = #tpu.dot_dimension_numbers<[1], [0], [0], [1], [0, 0, 1, 1], [], []>} : vector<8x128xbf16>, vector<128x512xbf16>, vector<8x512xf32> -> vector<8x512xf32>
    %119 = arith.addf %116, %118 : vector<8x512xf32>
    %120 = math.tanh %119 : vector<8x512xf32>
    %121 = vector.extract_strided_slice %120 {offsets = [0, 0], sizes = [8, 128], strides = [1, 1]} : vector<8x512xf32> to vector<8x128xf32>
    %cst_43 = arith.constant 1.000000e+00 : f32
    %122 = vector.broadcast %cst_43 : f32 to vector<8x128xf32>
    %123 = arith.addf %121, %122 : vector<8x128xf32>
    %cst_44 = arith.constant 5.000000e-01 : f32
    %124 = vector.broadcast %cst_44 : f32 to vector<8x128xf32>
    %125 = arith.mulf %124, %123 : vector<8x128xf32>
    %126 = vector.extract_strided_slice %120 {offsets = [0, 128], sizes = [8, 128], strides = [1, 1]} : vector<8x512xf32> to vector<8x128xf32>
    %cst_45 = arith.constant 1.000000e+00 : f32
    %127 = vector.broadcast %cst_45 : f32 to vector<8x128xf32>
    %128 = arith.addf %126, %127 : vector<8x128xf32>
    %cst_46 = arith.constant 5.000000e-01 : f32
    %129 = vector.broadcast %cst_46 : f32 to vector<8x128xf32>
    %130 = arith.mulf %129, %128 : vector<8x128xf32>
    %131 = vector.extract_strided_slice %120 {offsets = [0, 256], sizes = [8, 128], strides = [1, 1]} : vector<8x512xf32> to vector<8x128xf32>
    %132 = vector.extract_strided_slice %120 {offsets = [0, 384], sizes = [8, 128], strides = [1, 1]} : vector<8x512xf32> to vector<8x128xf32>
    %cst_47 = arith.constant 1.000000e+00 : f32
    %133 = vector.broadcast %cst_47 : f32 to vector<8x128xf32>
    %134 = arith.addf %132, %133 : vector<8x128xf32>
    %cst_48 = arith.constant 5.000000e-01 : f32
    %135 = vector.broadcast %cst_48 : f32 to vector<8x128xf32>
    %136 = arith.mulf %135, %134 : vector<8x128xf32>
    %137 = arith.mulf %130, %111 : vector<8x128xf32>
    %138 = arith.mulf %125, %131 : vector<8x128xf32>
    %139 = arith.addf %137, %138 : vector<8x128xf32>
    %140 = math.tanh %139 : vector<8x128xf32>
    %141 = arith.mulf %136, %140 : vector<8x128xf32>
    %c4_i32 = arith.constant 4 : i32
    %142 = arith.index_cast %c4_i32 : i32 to index
    %c0_49 = arith.constant 0 : index
    %c0_50 = arith.constant 0 : index
    %143 = vector.load %arg8[%142, %c0_49, %c0_50] : memref<8x8x512xf32, #tpu.memory_space<vmem>>, vector<1x8x512xf32>
    %144 = vector.shape_cast %143 : vector<1x8x512xf32> to vector<8x512xf32>
    %145 = arith.truncf %141 : vector<8x128xf32> to vector<8x128xbf16>
    %cst_51 = arith.constant dense<0.000000e+00> : vector<8x512xf32>
    %146 = tpu.matmul %145, %12, %cst_51 {dimension_numbers = #tpu.dot_dimension_numbers<[1], [0], [0], [1], [0, 0, 1, 1], [], []>} : vector<8x128xbf16>, vector<128x512xbf16>, vector<8x512xf32> -> vector<8x512xf32>
    %147 = arith.addf %144, %146 : vector<8x512xf32>
    %148 = math.tanh %147 : vector<8x512xf32>
    %149 = vector.extract_strided_slice %148 {offsets = [0, 0], sizes = [8, 128], strides = [1, 1]} : vector<8x512xf32> to vector<8x128xf32>
    %cst_52 = arith.constant 1.000000e+00 : f32
    %150 = vector.broadcast %cst_52 : f32 to vector<8x128xf32>
    %151 = arith.addf %149, %150 : vector<8x128xf32>
    %cst_53 = arith.constant 5.000000e-01 : f32
    %152 = vector.broadcast %cst_53 : f32 to vector<8x128xf32>
    %153 = arith.mulf %152, %151 : vector<8x128xf32>
    %154 = vector.extract_strided_slice %148 {offsets = [0, 128], sizes = [8, 128], strides = [1, 1]} : vector<8x512xf32> to vector<8x128xf32>
    %cst_54 = arith.constant 1.000000e+00 : f32
    %155 = vector.broadcast %cst_54 : f32 to vector<8x128xf32>
    %156 = arith.addf %154, %155 : vector<8x128xf32>
    %cst_55 = arith.constant 5.000000e-01 : f32
    %157 = vector.broadcast %cst_55 : f32 to vector<8x128xf32>
    %158 = arith.mulf %157, %156 : vector<8x128xf32>
    %159 = vector.extract_strided_slice %148 {offsets = [0, 256], sizes = [8, 128], strides = [1, 1]} : vector<8x512xf32> to vector<8x128xf32>
    %160 = vector.extract_strided_slice %148 {offsets = [0, 384], sizes = [8, 128], strides = [1, 1]} : vector<8x512xf32> to vector<8x128xf32>
    %cst_56 = arith.constant 1.000000e+00 : f32
    %161 = vector.broadcast %cst_56 : f32 to vector<8x128xf32>
    %162 = arith.addf %160, %161 : vector<8x128xf32>
    %cst_57 = arith.constant 5.000000e-01 : f32
    %163 = vector.broadcast %cst_57 : f32 to vector<8x128xf32>
    %164 = arith.mulf %163, %162 : vector<8x128xf32>
    %165 = arith.mulf %158, %139 : vector<8x128xf32>
    %166 = arith.mulf %153, %159 : vector<8x128xf32>
    %167 = arith.addf %165, %166 : vector<8x128xf32>
    %168 = math.tanh %167 : vector<8x128xf32>
    %169 = arith.mulf %164, %168 : vector<8x128xf32>
    %c5_i32 = arith.constant 5 : i32
    %170 = arith.index_cast %c5_i32 : i32 to index
    %c0_58 = arith.constant 0 : index
    %c0_59 = arith.constant 0 : index
    %171 = vector.load %arg8[%170, %c0_58, %c0_59] : memref<8x8x512xf32, #tpu.memory_space<vmem>>, vector<1x8x512xf32>
    %172 = vector.shape_cast %171 : vector<1x8x512xf32> to vector<8x512xf32>
    %173 = arith.truncf %169 : vector<8x128xf32> to vector<8x128xbf16>
    %cst_60 = arith.constant dense<0.000000e+00> : vector<8x512xf32>
    %174 = tpu.matmul %173, %12, %cst_60 {dimension_numbers = #tpu.dot_dimension_numbers<[1], [0], [0], [1], [0, 0, 1, 1], [], []>} : vector<8x128xbf16>, vector<128x512xbf16>, vector<8x512xf32> -> vector<8x512xf32>
    %175 = arith.addf %172, %174 : vector<8x512xf32>
    %176 = math.tanh %175 : vector<8x512xf32>
    %177 = vector.extract_strided_slice %176 {offsets = [0, 0], sizes = [8, 128], strides = [1, 1]} : vector<8x512xf32> to vector<8x128xf32>
    %cst_61 = arith.constant 1.000000e+00 : f32
    %178 = vector.broadcast %cst_61 : f32 to vector<8x128xf32>
    %179 = arith.addf %177, %178 : vector<8x128xf32>
    %cst_62 = arith.constant 5.000000e-01 : f32
    %180 = vector.broadcast %cst_62 : f32 to vector<8x128xf32>
    %181 = arith.mulf %180, %179 : vector<8x128xf32>
    %182 = vector.extract_strided_slice %176 {offsets = [0, 128], sizes = [8, 128], strides = [1, 1]} : vector<8x512xf32> to vector<8x128xf32>
    %cst_63 = arith.constant 1.000000e+00 : f32
    %183 = vector.broadcast %cst_63 : f32 to vector<8x128xf32>
    %184 = arith.addf %182, %183 : vector<8x128xf32>
    %cst_64 = arith.constant 5.000000e-01 : f32
    %185 = vector.broadcast %cst_64 : f32 to vector<8x128xf32>
    %186 = arith.mulf %185, %184 : vector<8x128xf32>
    %187 = vector.extract_strided_slice %176 {offsets = [0, 256], sizes = [8, 128], strides = [1, 1]} : vector<8x512xf32> to vector<8x128xf32>
    %188 = vector.extract_strided_slice %176 {offsets = [0, 384], sizes = [8, 128], strides = [1, 1]} : vector<8x512xf32> to vector<8x128xf32>
    %cst_65 = arith.constant 1.000000e+00 : f32
    %189 = vector.broadcast %cst_65 : f32 to vector<8x128xf32>
    %190 = arith.addf %188, %189 : vector<8x128xf32>
    %cst_66 = arith.constant 5.000000e-01 : f32
    %191 = vector.broadcast %cst_66 : f32 to vector<8x128xf32>
    %192 = arith.mulf %191, %190 : vector<8x128xf32>
    %193 = arith.mulf %186, %167 : vector<8x128xf32>
    %194 = arith.mulf %181, %187 : vector<8x128xf32>
    %195 = arith.addf %193, %194 : vector<8x128xf32>
    %196 = math.tanh %195 : vector<8x128xf32>
    %197 = arith.mulf %192, %196 : vector<8x128xf32>
    %c6_i32 = arith.constant 6 : i32
    %198 = arith.index_cast %c6_i32 : i32 to index
    %c0_67 = arith.constant 0 : index
    %c0_68 = arith.constant 0 : index
    %199 = vector.load %arg8[%198, %c0_67, %c0_68] : memref<8x8x512xf32, #tpu.memory_space<vmem>>, vector<1x8x512xf32>
    %200 = vector.shape_cast %199 : vector<1x8x512xf32> to vector<8x512xf32>
    %201 = arith.truncf %197 : vector<8x128xf32> to vector<8x128xbf16>
    %cst_69 = arith.constant dense<0.000000e+00> : vector<8x512xf32>
    %202 = tpu.matmul %201, %12, %cst_69 {dimension_numbers = #tpu.dot_dimension_numbers<[1], [0], [0], [1], [0, 0, 1, 1], [], []>} : vector<8x128xbf16>, vector<128x512xbf16>, vector<8x512xf32> -> vector<8x512xf32>
    %203 = arith.addf %200, %202 : vector<8x512xf32>
    %204 = math.tanh %203 : vector<8x512xf32>
    %205 = vector.extract_strided_slice %204 {offsets = [0, 0], sizes = [8, 128], strides = [1, 1]} : vector<8x512xf32> to vector<8x128xf32>
    %cst_70 = arith.constant 1.000000e+00 : f32
    %206 = vector.broadcast %cst_70 : f32 to vector<8x128xf32>
    %207 = arith.addf %205, %206 : vector<8x128xf32>
    %cst_71 = arith.constant 5.000000e-01 : f32
    %208 = vector.broadcast %cst_71 : f32 to vector<8x128xf32>
    %209 = arith.mulf %208, %207 : vector<8x128xf32>
    %210 = vector.extract_strided_slice %204 {offsets = [0, 128], sizes = [8, 128], strides = [1, 1]} : vector<8x512xf32> to vector<8x128xf32>
    %cst_72 = arith.constant 1.000000e+00 : f32
    %211 = vector.broadcast %cst_72 : f32 to vector<8x128xf32>
    %212 = arith.addf %210, %211 : vector<8x128xf32>
    %cst_73 = arith.constant 5.000000e-01 : f32
    %213 = vector.broadcast %cst_73 : f32 to vector<8x128xf32>
    %214 = arith.mulf %213, %212 : vector<8x128xf32>
    %215 = vector.extract_strided_slice %204 {offsets = [0, 256], sizes = [8, 128], strides = [1, 1]} : vector<8x512xf32> to vector<8x128xf32>
    %216 = vector.extract_strided_slice %204 {offsets = [0, 384], sizes = [8, 128], strides = [1, 1]} : vector<8x512xf32> to vector<8x128xf32>
    %cst_74 = arith.constant 1.000000e+00 : f32
    %217 = vector.broadcast %cst_74 : f32 to vector<8x128xf32>
    %218 = arith.addf %216, %217 : vector<8x128xf32>
    %cst_75 = arith.constant 5.000000e-01 : f32
    %219 = vector.broadcast %cst_75 : f32 to vector<8x128xf32>
    %220 = arith.mulf %219, %218 : vector<8x128xf32>
    %221 = arith.mulf %214, %195 : vector<8x128xf32>
    %222 = arith.mulf %209, %215 : vector<8x128xf32>
    %223 = arith.addf %221, %222 : vector<8x128xf32>
    %224 = math.tanh %223 : vector<8x128xf32>
    %225 = arith.mulf %220, %224 : vector<8x128xf32>
    %c7_i32 = arith.constant 7 : i32
    %226 = arith.index_cast %c7_i32 : i32 to index
    %c0_76 = arith.constant 0 : index
    %c0_77 = arith.constant 0 : index
    %227 = vector.load %arg8[%226, %c0_76, %c0_77] : memref<8x8x512xf32, #tpu.memory_space<vmem>>, vector<1x8x512xf32>
    %228 = vector.shape_cast %227 : vector<1x8x512xf32> to vector<8x512xf32>
    %229 = arith.truncf %225 : vector<8x128xf32> to vector<8x128xbf16>
    %cst_78 = arith.constant dense<0.000000e+00> : vector<8x512xf32>
    %230 = tpu.matmul %229, %12, %cst_78 {dimension_numbers = #tpu.dot_dimension_numbers<[1], [0], [0], [1], [0, 0, 1, 1], [], []>} : vector<8x128xbf16>, vector<128x512xbf16>, vector<8x512xf32> -> vector<8x512xf32>
    %231 = arith.addf %228, %230 : vector<8x512xf32>
    %232 = math.tanh %231 : vector<8x512xf32>
    %233 = vector.extract_strided_slice %232 {offsets = [0, 0], sizes = [8, 128], strides = [1, 1]} : vector<8x512xf32> to vector<8x128xf32>
    %cst_79 = arith.constant 1.000000e+00 : f32
    %234 = vector.broadcast %cst_79 : f32 to vector<8x128xf32>
    %235 = arith.addf %233, %234 : vector<8x128xf32>
    %cst_80 = arith.constant 5.000000e-01 : f32
    %236 = vector.broadcast %cst_80 : f32 to vector<8x128xf32>
    %237 = arith.mulf %236, %235 : vector<8x128xf32>
    %238 = vector.extract_strided_slice %232 {offsets = [0, 128], sizes = [8, 128], strides = [1, 1]} : vector<8x512xf32> to vector<8x128xf32>
    %cst_81 = arith.constant 1.000000e+00 : f32
    %239 = vector.broadcast %cst_81 : f32 to vector<8x128xf32>
    %240 = arith.addf %238, %239 : vector<8x128xf32>
    %cst_82 = arith.constant 5.000000e-01 : f32
    %241 = vector.broadcast %cst_82 : f32 to vector<8x128xf32>
    %242 = arith.mulf %241, %240 : vector<8x128xf32>
    %243 = vector.extract_strided_slice %232 {offsets = [0, 256], sizes = [8, 128], strides = [1, 1]} : vector<8x512xf32> to vector<8x128xf32>
    %244 = vector.extract_strided_slice %232 {offsets = [0, 384], sizes = [8, 128], strides = [1, 1]} : vector<8x512xf32> to vector<8x128xf32>
    %cst_83 = arith.constant 1.000000e+00 : f32
    %245 = vector.broadcast %cst_83 : f32 to vector<8x128xf32>
    %246 = arith.addf %244, %245 : vector<8x128xf32>
    %cst_84 = arith.constant 5.000000e-01 : f32
    %247 = vector.broadcast %cst_84 : f32 to vector<8x128xf32>
    %248 = arith.mulf %247, %246 : vector<8x128xf32>
    %249 = arith.mulf %242, %223 : vector<8x128xf32>
    %250 = arith.mulf %237, %243 : vector<8x128xf32>
    %251 = arith.addf %249, %250 : vector<8x128xf32>
    %252 = math.tanh %251 : vector<8x128xf32>
    %253 = arith.mulf %248, %252 : vector<8x128xf32>
    %c8_i32 = arith.constant 8 : i32
    %c0_85 = arith.constant 0 : index
    %c0_86 = arith.constant 0 : index
    %254 = vector.load %arg5[%c0_85, %c0_86] : memref<128x128xf32, #tpu.memory_space<vmem>>, vector<128x128xf32>
    %cst_87 = arith.constant dense<0.000000e+00> : vector<8x128xf32>
    %255 = tpu.matmul %253, %254, %cst_87 {dimension_numbers = #tpu.dot_dimension_numbers<[1], [0], [0], [1], [0, 0, 1, 1], [], []>} : vector<8x128xf32>, vector<128x128xf32>, vector<8x128xf32> -> vector<8x128xf32>
    %c0_88 = arith.constant 0 : index
    %c0_89 = arith.constant 0 : index
    %256 = vector.load %arg6[%c0_88, %c0_89] : memref<1x128xf32, #tpu.memory_space<vmem>>, vector<1x128xf32>
    %257 = vector.broadcast %256 : vector<1x128xf32> to vector<8x128xf32>
    %258 = arith.addf %255, %257 : vector<8x128xf32>
    %c0_90 = arith.constant 0 : index
    %c0_91 = arith.constant 0 : index
    %259 = vector.load %arg7[%c0_90, %c0_91] : memref<8x128xf32, #tpu.memory_space<vmem>>, vector<8x128xf32>
    tpu.vector_store %arg7[%c0_90, %c0_91], %258 {strides = array<i32>} : memref<8x128xf32, #tpu.memory_space<vmem>>, vector<8x128xf32>,
    return
  }
  func.func @transform_0(%arg0: i32) -> (i32, i32) {
    %c0_i32 = arith.constant 0 : i32
    %c0_i32_0 = arith.constant 0 : i32
    return %c0_i32, %arg0 : i32, i32
  }
  func.func @transform_1(%arg0: i32) -> (i32, i32) {
    %c0_i32 = arith.constant 0 : i32
    %c0_i32_0 = arith.constant 0 : i32
    %c0_i32_1 = arith.constant 0 : i32
    return %c0_i32, %c0_i32_0 : i32, i32
  }
  func.func @transform_2(%arg0: i32) -> (i32, i32) {
    %c0_i32 = arith.constant 0 : i32
    %c0_i32_0 = arith.constant 0 : i32
    %c0_i32_1 = arith.constant 0 : i32
    return %c0_i32, %c0_i32_0 : i32, i32
  }
  func.func @transform_3(%arg0: i32) -> (i32, i32) {
    %c0_i32 = arith.constant 0 : i32
    %c0_i32_0 = arith.constant 0 : i32
    %c0_i32_1 = arith.constant 0 : i32
    return %c0_i32, %c0_i32_0 : i32, i32
  }
  func.func @transform_4(%arg0: i32) -> (i32, i32) {
    %c0_i32 = arith.constant 0 : i32
    %c0_i32_0 = arith.constant 0 : i32
    %c0_i32_1 = arith.constant 0 : i32
    return %c0_i32, %c0_i32_0 : i32, i32
  }
  func.func @transform_5(%arg0: i32) -> (i32, i32) {
    %c0_i32 = arith.constant 0 : i32
    %c0_i32_0 = arith.constant 0 : i32
    %c0_i32_1 = arith.constant 0 : i32
    return %c0_i32, %c0_i32_0 : i32, i32
  }
  func.func @transform_6(%arg0: i32) -> (i32, i32) {
    %c0_i32 = arith.constant 0 : i32
    %c0_i32_0 = arith.constant 0 : i32
    return %arg0, %c0_i32 : i32, i32
  }
}

</mosaic_0001>

<llo_original>
// kernel: tpu_custom_call.1
$region0: #{tpu_custom_call.1}
  #allocation0 [shape = 'u32[]', space=smem, size = 0x4, offset = 0x4, fixed_abs, tag = 'smem constant byte address 0x4 - core index']
  #allocation1 [shape = 'u32[144,128]{1,0:T(1,128)}', space=vmem, size = 0x12000, scoped, tag = 'internal scratch']
  #allocation2 [shape = 'f32[8,8,512]{2,1,0:T(8,128)}', space=vmem, size = 0x20000, scoped, tag = 'scratch operand']
  %s0 = inlined_call_operand.hbm [shape: f32[8,8], index: 0, kind: input, shape index: {}]
  %s1 = inlined_call_operand.hbm [shape: f32[1,512], index: 1, kind: input, shape index: {}]
  %s2 = inlined_call_operand.hbm [shape: f32[128,512], index: 2, kind: input, shape index: {}]
  %s3 = inlined_call_operand.vmem [shape: f32[1,512], index: 3, kind: input, shape index: {}]
  %s4 = inlined_call_operand.hbm [shape: f32[128,128], index: 4, kind: input, shape index: {}]
  %s5 = inlined_call_operand.vmem [shape: f32[1,128], index: 5, kind: input, shape index: {}]
  %s6 = inlined_call_operand.hbm [shape: f32[8,128], index: 6, kind: output, shape index: {}]
  %s7 = sld [smem:[#allocation0]]
  $region50: #{tpu_custom_call.1} parent=0
    _
  %s9 = ssub.s32 1, %s7
  %s10 = scalar_select 0, %s9, %s7
  $region1: #{tpu_custom_call.1} parent=0
    #allocation3 [shape = 'u8[4096]{0}', space=vmem, size = 0x1000, scoped, tag = 'input window, operand 0, single buffered']
    #allocation4 [shape = 's32[1]{0}', space=sflag, size = 0x4, scoped, tag = 'scoped memory for tpu_custom_call.1']
    #allocation5 [shape = 's32[1]{0}', space=sflag, size = 0x4, scoped, tag = 'scoped memory for tpu_custom_call.1']
    #allocation6 [shape = 'u8[2048]{0}', space=vmem, size = 0x800, scoped, tag = 'input window, operand 1, single buffered']
    #allocation7 [shape = 's32[1]{0}', space=sflag, size = 0x4, scoped, tag = 'scoped memory for tpu_custom_call.1']
    #allocation8 [shape = 'u8[262144]{0}', space=vmem, size = 0x40000, scoped, tag = 'input window, operand 2, single buffered']
    #allocation9 [shape = 'u8[65536]{0}', space=vmem, size = 0x10000, scoped, tag = 'input window, operand 4, single buffered']
    #allocation10 [shape = 's32[1]{0}', space=sflag, size = 0x4, scoped, tag = 'scoped memory for tpu_custom_call.1']
    #allocation11 [shape = 'u8[4096]{0}', space=vmem, size = 0x1000, scoped, tag = 'output window, operand 0, single buffered']
    %11 = vsyncpa [#allocation4], 0
    %12 = vsyncpa [#allocation7], 0
    %13 = vsyncpa [#allocation10], 0
    %14 = vsyncpa [#allocation5], 0
    // Predicated region
    $region2: #{tpu_custom_call.1} parent=1 // pred_check
      _
    $region3: #{tpu_custom_call.1} parent=1 // pred_check_branch
      %16 = sbr.rel (0) target = $region5
    $region4: #{tpu_custom_call.1} parent=1 // pred_region
      %s18 = ssub.s32 128, 128
      %19 = vsyncadd [#allocation4], %s18
      %s21 = sshll.u32 [#allocation3], 4
      %s22 = int_to_ptr.vmem [resolvable:$true] %s21
      %24 = dma.hbm_to_vmem [thread:$0]  %s0, 128, %s22, [#allocation4]
    $region5: #{tpu_custom_call.1} parent=1 // pred_fallthru
      _
    // Predicated region
    $region6: #{tpu_custom_call.1} parent=1 // pred_check
      _
    $region7: #{tpu_custom_call.1} parent=1 // pred_check_branch
      %26 = sbr.rel (0) target = $region9
    $region8: #{tpu_custom_call.1} parent=1 // pred_region
      %s28 = ssub.s32 64, 64
      %29 = vsyncadd [#allocation7], %s28
      %s31 = sshll.u32 [#allocation6], 4
      %s32 = int_to_ptr.vmem [resolvable:$true] %s31
      %34 = dma.hbm_to_vmem [thread:$0]  %s1, 64, %s32, [#allocation7]
    $region9: #{tpu_custom_call.1} parent=1 // pred_fallthru
      _
    // Predicated region
    $region10: #{tpu_custom_call.1} parent=1 // pred_check
      _
    $region11: #{tpu_custom_call.1} parent=1 // pred_check_branch
      %36 = sbr.rel (0) target = $region13
    $region12: #{tpu_custom_call.1} parent=1 // pred_region
      %s38 = ssub.s32 8192, 8192
      %39 = vsyncadd [#allocation7], %s38
      %s40 = sshll.u32 [#allocation8], 4
      %s41 = int_to_ptr.vmem [resolvable:$true] %s40
      %46 = dma.hbm_to_vmem [thread:$0]  %s2, 8192, %s41, [#allocation7], 512, 512, 32
    $region13: #{tpu_custom_call.1} parent=1 // pred_fallthru
      _
    // Predicated region
    $region14: #{tpu_custom_call.1} parent=1 // pred_check
      _
    $region15: #{tpu_custom_call.1} parent=1 // pred_check_branch
      %48 = sbr.rel (0) target = $region17
    $region16: #{tpu_custom_call.1} parent=1 // pred_region
      _
    $region17: #{tpu_custom_call.1} parent=1 // pred_fallthru
      _
    // Predicated region
    $region18: #{tpu_custom_call.1} parent=1 // pred_check
      _
    $region19: #{tpu_custom_call.1} parent=1 // pred_check_branch
      %50 = sbr.rel (0) target = $region21
    $region20: #{tpu_custom_call.1} parent=1 // pred_region
      %s52 = ssub.s32 2048, 2048
      %53 = vsyncadd [#allocation10], %s52
      %s54 = sshll.u32 [#allocation9], 4
      %s55 = int_to_ptr.vmem [resolvable:$true] %s54
      %60 = dma.hbm_to_vmem [thread:$0]  %s4, 2048, %s55, [#allocation10], 128, 128, 8
    $region21: #{tpu_custom_call.1} parent=1 // pred_fallthru
      _
    // Predicated region
    $region22: #{tpu_custom_call.1} parent=1 // pred_check
      _
    $region23: #{tpu_custom_call.1} parent=1 // pred_check_branch
      %62 = sbr.rel (0) target = $region25
    $region24: #{tpu_custom_call.1} parent=1 // pred_region
      _
    $region25: #{tpu_custom_call.1} parent=1 // pred_fallthru
      _
    // Predicated region
    $region26: #{tpu_custom_call.1} parent=1 // pred_check
      _
    $region27: #{tpu_custom_call.1} parent=1 // pred_check_branch
      %64 = sbr.rel (0) target = $region29
    $region28: #{tpu_custom_call.1} parent=1 // pred_region
      %65 = dma.done [#allocation4], 128
    $region29: #{tpu_custom_call.1} parent=1 // pred_fallthru
      _
    // Predicated region
    $region30: #{tpu_custom_call.1} parent=1 // pred_check
      _
    $region31: #{tpu_custom_call.1} parent=1 // pred_check_branch
      %67 = sbr.rel (0) target = $region33
    $region32: #{tpu_custom_call.1} parent=1 // pred_region
      %68 = dma.done [#allocation7], 64
    $region33: #{tpu_custom_call.1} parent=1 // pred_fallthru
      _
    // Predicated region
    $region34: #{tpu_custom_call.1} parent=1 // pred_check
      _
    $region35: #{tpu_custom_call.1} parent=1 // pred_check_branch
      %70 = sbr.rel (0) target = $region37
    $region36: #{tpu_custom_call.1} parent=1 // pred_region
      %71 = dma.done [#allocation7], 8192
    $region37: #{tpu_custom_call.1} parent=1 // pred_fallthru
      _
    // Predicated region
    $region38: #{tpu_custom_call.1} parent=1 // pred_check
      _
    $region39: #{tpu_custom_call.1} parent=1 // pred_check_branch
      %73 = sbr.rel (0) target = $region41
    $region40: #{tpu_custom_call.1} parent=1 // pred_region
      %74 = dma.done [#allocation10], 2048
    $region41: #{tpu_custom_call.1} parent=1 // pred_fallthru
      _
    %v76 = vlaneseq
    %v77 = vand.u32 %v76, 127
    %v78 = vadd.s32 %v77, 128
    %v79 = vadd.s32 %v77, 256
    %v80 = vadd.s32 %v77, 384
    %vm81 = vcmp.ge.s32.totalorder %v77, 256
    %vm82 = vcmp.ge.s32.totalorder %v78, 256
    %vm83 = vcmp.ge.s32.totalorder %v79, 256
    %vm84 = vcmp.ge.s32.totalorder %v80, 256
    %vm85 = vcmp.lt.s32.totalorder %v77, 384
    %vm86 = vcmp.lt.s32.totalorder %v78, 384
    %vm87 = vcmp.lt.s32.totalorder %v79, 384
    %vm88 = vcmp.lt.s32.totalorder %v80, 384
    %vm89 = vmand %vm81, %vm85
    %vm90 = vmand %vm82, %vm86
    %vm91 = vmand %vm83, %vm87
    %vm92 = vmand %vm84, %vm88
    %v93 = vsel %vm89, 1.0, 0.5
    %v94 = vsel %vm90, 1.0, 0.5
    %v95 = vsel %vm91, 1.0, 0.5
    %v96 = vsel %vm92, 1.0, 0.5
    %v97 = vld [vmem:[#allocation8] sm:$0xff]
    %v98 = vld [vmem:[#allocation8 + $0x8] sm:$0xff]
    %v99 = vld [vmem:[#allocation8 + $0x10] sm:$0xff]
    %v100 = vld [vmem:[#allocation8 + $0x18] sm:$0xff]
    %v101 = vld [vmem:[#allocation8 + $0x20] sm:$0xff]
    %v102 = vld [vmem:[#allocation8 + $0x28] sm:$0xff]
    %v103 = vld [vmem:[#allocation8 + $0x30] sm:$0xff]
    %v104 = vld [vmem:[#allocation8 + $0x38] sm:$0xff]
    %v105 = vld [vmem:[#allocation8 + $0x40] sm:$0xff]
    %v106 = vld [vmem:[#allocation8 + $0x48] sm:$0xff]
    %v107 = vld [vmem:[#allocation8 + $0x50] sm:$0xff]
    %v108 = vld [vmem:[#allocation8 + $0x58] sm:$0xff]
    %v109 = vld [vmem:[#allocation8 + $0x60] sm:$0xff]
    %v110 = vld [vmem:[#allocation8 + $0x68] sm:$0xff]
    %v111 = vld [vmem:[#allocation8 + $0x70] sm:$0xff]
    %v112 = vld [vmem:[#allocation8 + $0x78] sm:$0xff]
    %v113 = vld [vmem:[#allocation8 + $0x80] sm:$0xff]
    %v114 = vld [vmem:[#allocation8 + $0x88] sm:$0xff]
    %v115 = vld [vmem:[#allocation8 + $0x90] sm:$0xff]
    %v116 = vld [vmem:[#allocation8 + $0x98] sm:$0xff]
    %v117 = vld [vmem:[#allocation8 + $0xa0] sm:$0xff]
    %v118 = vld [vmem:[#allocation8 + $0xa8] sm:$0xff]
    %v119 = vld [vmem:[#allocation8 + $0xb0] sm:$0xff]
    %v120 = vld [vmem:[#allocation8 + $0xb8] sm:$0xff]
    %v121 = vld [vmem:[#allocation8 + $0xc0] sm:$0xff]
    %v122 = vld [vmem:[#allocation8 + $0xc8] sm:$0xff]
    %v123 = vld [vmem:[#allocation8 + $0xd0] sm:$0xff]
    %v124 = vld [vmem:[#allocation8 + $0xd8] sm:$0xff]
    %v125 = vld [vmem:[#allocation8 + $0xe0] sm:$0xff]
    %v126 = vld [vmem:[#allocation8 + $0xe8] sm:$0xff]
    %v127 = vld [vmem:[#allocation8 + $0xf0] sm:$0xff]
    %v128 = vld [vmem:[#allocation8 + $0xf8] sm:$0xff]
    %v129 = vld [vmem:[#allocation8 + $0x100] sm:$0xff]
    %v130 = vld [vmem:[#allocation8 + $0x108] sm:$0xff]
    %v131 = vld [vmem:[#allocation8 + $0x110] sm:$0xff]
    %v132 = vld [vmem:[#allocation8 + $0x118] sm:$0xff]
    %v133 = vld [vmem:[#allocation8 + $0x120] sm:$0xff]
    %v134 = vld [vmem:[#allocation8 + $0x128] sm:$0xff]
    %v135 = vld [vmem:[#allocation8 + $0x130] sm:$0xff]
    %v136 = vld [vmem:[#allocation8 + $0x138] sm:$0xff]
    %v137 = vld [vmem:[#allocation8 + $0x140] sm:$0xff]
    %v138 = vld [vmem:[#allocation8 + $0x148] sm:$0xff]
    %v139 = vld [vmem:[#allocation8 + $0x150] sm:$0xff]
    %v140 = vld [vmem:[#allocation8 + $0x158] sm:$0xff]
    %v141 = vld [vmem:[#allocation8 + $0x160] sm:$0xff]
    %v142 = vld [vmem:[#allocation8 + $0x168] sm:$0xff]
    %v143 = vld [vmem:[#allocation8 + $0x170] sm:$0xff]
    %v144 = vld [vmem:[#allocation8 + $0x178] sm:$0xff]
    %v145 = vld [vmem:[#allocation8 + $0x180] sm:$0xff]
    %v146 = vld [vmem:[#allocation8 + $0x188] sm:$0xff]
    %v147 = vld [vmem:[#allocation8 + $0x190] sm:$0xff]
    %v148 = vld [vmem:[#allocation8 + $0x198] sm:$0xff]
    %v149 = vld [vmem:[#allocation8 + $0x1a0] sm:$0xff]
    %v150 = vld [vmem:[#allocation8 + $0x1a8] sm:$0xff]
    %v151 = vld [vmem:[#allocation8 + $0x1b0] sm:$0xff]
    %v152 = vld [vmem:[#allocation8 + $0x1b8] sm:$0xff]
    %v153 = vld [vmem:[#allocation8 + $0x1c0] sm:$0xff]
    %v154 = vld [vmem:[#allocation8 + $0x1c8] sm:$0xff]
    %v155 = vld [vmem:[#allocation8 + $0x1d0] sm:$0xff]
    %v156 = vld [vmem:[#allocation8 + $0x1d8] sm:$0xff]
    %v157 = vld [vmem:[#allocation8 + $0x1e0] sm:$0xff]
    %v158 = vld [vmem:[#allocation8 + $0x1e8] sm:$0xff]
    %v159 = vld [vmem:[#allocation8 + $0x1f0] sm:$0xff]
    %v160 = vld [vmem:[#allocation8 + $0x1f8] sm:$0xff]
    %v161 = vmul.f32 %v97, %v93
    %v162 = vmul.f32 %v98, %v94
    %v163 = vmul.f32 %v99, %v95
    %v164 = vmul.f32 %v100, %v96
    %v165 = vmul.f32 %v101, %v93
    %v166 = vmul.f32 %v102, %v94
    %v167 = vmul.f32 %v103, %v95
    %v168 = vmul.f32 %v104, %v96
    %v169 = vmul.f32 %v105, %v93
    %v170 = vmul.f32 %v106, %v94
    %v171 = vmul.f32 %v107, %v95
    %v172 = vmul.f32 %v108, %v96
    %v173 = vmul.f32 %v109, %v93
    %v174 = vmul.f32 %v110, %v94
    %v175 = vmul.f32 %v111, %v95
    %v176 = vmul.f32 %v112, %v96
    %v177 = vmul.f32 %v113, %v93
    %v178 = vmul.f32 %v114, %v94
    %v179 = vmul.f32 %v115, %v95
    %v180 = vmul.f32 %v116, %v96
    %v181 = vmul.f32 %v117, %v93
    %v182 = vmul.f32 %v118, %v94
    %v183 = vmul.f32 %v119, %v95
    %v184 = vmul.f32 %v120, %v96
    %v185 = vmul.f32 %v121, %v93
    %v186 = vmul.f32 %v122, %v94
    %v187 = vmul.f32 %v123, %v95
    %v188 = vmul.f32 %v124, %v96
    %v189 = vmul.f32 %v125, %v93
    %v190 = vmul.f32 %v126, %v94
    %v191 = vmul.f32 %v127, %v95
    %v192 = vmul.f32 %v128, %v96
    %v193 = vmul.f32 %v129, %v93
    %v194 = vmul.f32 %v130, %v94
    %v195 = vmul.f32 %v131, %v95
    %v196 = vmul.f32 %v132, %v96
    %v197 = vmul.f32 %v133, %v93
    %v198 = vmul.f32 %v134, %v94
    %v199 = vmul.f32 %v135, %v95
    %v200 = vmul.f32 %v136, %v96
    %v201 = vmul.f32 %v137, %v93
    %v202 = vmul.f32 %v138, %v94
    %v203 = vmul.f32 %v139, %v95
    %v204 = vmul.f32 %v140, %v96
    %v205 = vmul.f32 %v141, %v93
    %v206 = vmul.f32 %v142, %v94
    %v207 = vmul.f32 %v143, %v95
    %v208 = vmul.f32 %v144, %v96
    %v209 = vmul.f32 %v145, %v93
    %v210 = vmul.f32 %v146, %v94
    %v211 = vmul.f32 %v147, %v95
    %v212 = vmul.f32 %v148, %v96
    %v213 = vmul.f32 %v149, %v93
    %v214 = vmul.f32 %v150, %v94
    %v215 = vmul.f32 %v151, %v95
    %v216 = vmul.f32 %v152, %v96
    %v217 = vmul.f32 %v153, %v93
    %v218 = vmul.f32 %v154, %v94
    %v219 = vmul.f32 %v155, %v95
    %v220 = vmul.f32 %v156, %v96
    %v221 = vmul.f32 %v157, %v93
    %v222 = vmul.f32 %v158, %v94
    %v223 = vmul.f32 %v159, %v95
    %v224 = vmul.f32 %v160, %v96
    %v225 = vpack.c.bf16 %v165, %v161
    %v226 = vpack.c.bf16 %v166, %v162
    %v227 = vpack.c.bf16 %v167, %v163
    %v228 = vpack.c.bf16 %v168, %v164
    %v229 = vpack.c.bf16 %v173, %v169
    %v230 = vpack.c.bf16 %v174, %v170
    %v231 = vpack.c.bf16 %v175, %v171
    %v232 = vpack.c.bf16 %v176, %v172
    %v233 = vpack.c.bf16 %v181, %v177
    %v234 = vpack.c.bf16 %v182, %v178
    %v235 = vpack.c.bf16 %v183, %v179
    %v236 = vpack.c.bf16 %v184, %v180
    %v237 = vpack.c.bf16 %v189, %v185
    %v238 = vpack.c.bf16 %v190, %v186
    %v239 = vpack.c.bf16 %v191, %v187
    %v240 = vpack.c.bf16 %v192, %v188
    %v241 = vpack.c.bf16 %v197, %v193
    %v242 = vpack.c.bf16 %v198, %v194
    %v243 = vpack.c.bf16 %v199, %v195
    %v244 = vpack.c.bf16 %v200, %v196
    %v245 = vpack.c.bf16 %v205, %v201
    %v246 = vpack.c.bf16 %v206, %v202
    %v247 = vpack.c.bf16 %v207, %v203
    %v248 = vpack.c.bf16 %v208, %v204
    %v249 = vpack.c.bf16 %v213, %v209
    %v250 = vpack.c.bf16 %v214, %v210
    %v251 = vpack.c.bf16 %v215, %v211
    %v252 = vpack.c.bf16 %v216, %v212
    %v253 = vpack.c.bf16 %v221, %v217
    %v254 = vpack.c.bf16 %v222, %v218
    %v255 = vpack.c.bf16 %v223, %v219
    %v256 = vpack.c.bf16 %v224, %v220
    %v257 = vld [vmem:[#allocation3] sm:$0xff]
    %v258 = vlaneseq
    %v259 = vshrl.u32 %v258, 7
    %v260 = vsub.s32 0, %v259
    %v261 = vrot.slane %v257, %v260
    %263 = vbcast.lane.b32.xlu0 %v261, 256
    %v264 = vpop.permute.xlu0 %263
    %v265 = vlaneseq
    %v266 = vshrl.u32 %v265, 7
    %v267 = vsub.s32 1, %v266
    %v268 = vrot.slane %v257, %v267
    %270 = vbcast.lane.b32.xlu0 %v268, 256
    %v271 = vpop.permute.xlu0 %270
    %v272 = vlaneseq
    %v273 = vshrl.u32 %v272, 7
    %v274 = vsub.s32 2, %v273
    %v275 = vrot.slane %v257, %v274
    %277 = vbcast.lane.b32.xlu0 %v275, 256
    %v278 = vpop.permute.xlu0 %277
    %v279 = vlaneseq
    %v280 = vshrl.u32 %v279, 7
    %v281 = vsub.s32 3, %v280
    %v282 = vrot.slane %v257, %v281
    %284 = vbcast.lane.b32.xlu0 %v282, 256
    %v285 = vpop.permute.xlu0 %284
    %v286 = vlaneseq
    %v287 = vshrl.u32 %v286, 7
    %v288 = vsub.s32 4, %v287
    %v289 = vrot.slane %v257, %v288
    %291 = vbcast.lane.b32.xlu0 %v289, 256
    %v292 = vpop.permute.xlu0 %291
    %v293 = vlaneseq
    %v294 = vshrl.u32 %v293, 7
    %v295 = vsub.s32 5, %v294
    %v296 = vrot.slane %v257, %v295
    %298 = vbcast.lane.b32.xlu0 %v296, 256
    %v299 = vpop.permute.xlu0 %298
    %v300 = vlaneseq
    %v301 = vshrl.u32 %v300, 7
    %v302 = vsub.s32 6, %v301
    %v303 = vrot.slane %v257, %v302
    %305 = vbcast.lane.b32.xlu0 %v303, 256
    %v306 = vpop.permute.xlu0 %305
    %v307 = vlaneseq
    %v308 = vshrl.u32 %v307, 7
    %v309 = vsub.s32 7, %v308
    %v310 = vrot.slane %v257, %v309
    %312 = vbcast.lane.b32.xlu0 %v310, 256
    %v313 = vpop.permute.xlu0 %312
    %v314 = vld [vmem:[#allocation6] sm:$0xf]
    %v316 = vlaneseq
    %v317 = vshrl.u32 %v316, 7
    %v318 = vsub.s32 0, %v317
    %v319 = vrot.slane %v314, %v318
    %v320 = vlaneseq
    %v321 = vshrl.u32 %v320, 7
    %v322 = vsub.s32 1, %v321
    %v323 = vrot.slane %v314, %v322
    %v324 = vlaneseq
    %v325 = vshrl.u32 %v324, 7
    %v326 = vsub.s32 2, %v325
    %v327 = vrot.slane %v314, %v326
    %v328 = vlaneseq
    %v329 = vshrl.u32 %v328, 7
    %v330 = vsub.s32 3, %v329
    %v331 = vrot.slane %v314, %v330
    %v336 = vmul.f32 %v264, %v319
    %v337 = vmul.f32 %v264, %v323
    %v338 = vmul.f32 %v264, %v327
    %v339 = vmul.f32 %v264, %v331
    %v340 = vmul.f32 %v271, %v319
    %v341 = vmul.f32 %v271, %v323
    %v342 = vmul.f32 %v271, %v327
    %v343 = vmul.f32 %v271, %v331
    %v344 = vmul.f32 %v278, %v319
    %v345 = vmul.f32 %v278, %v323
    %v346 = vmul.f32 %v278, %v327
    %v347 = vmul.f32 %v278, %v331
    %v348 = vmul.f32 %v285, %v319
    %v349 = vmul.f32 %v285, %v323
    %v350 = vmul.f32 %v285, %v327
    %v351 = vmul.f32 %v285, %v331
    %v352 = vmul.f32 %v292, %v319
    %v353 = vmul.f32 %v292, %v323
    %v354 = vmul.f32 %v292, %v327
    %v355 = vmul.f32 %v292, %v331
    %v356 = vmul.f32 %v299, %v319
    %v357 = vmul.f32 %v299, %v323
    %v358 = vmul.f32 %v299, %v327
    %v359 = vmul.f32 %v299, %v331
    %v360 = vmul.f32 %v306, %v319
    %v361 = vmul.f32 %v306, %v323
    %v362 = vmul.f32 %v306, %v327
    %v363 = vmul.f32 %v306, %v331
    %v364 = vmul.f32 %v313, %v319
    %v365 = vmul.f32 %v313, %v323
    %v366 = vmul.f32 %v313, %v327
    %v367 = vmul.f32 %v313, %v331
    %v368 = vld [vmem:[%s3] sm:$0xf]
    %v370 = vlaneseq
    %v371 = vshrl.u32 %v370, 7
    %v372 = vsub.s32 0, %v371
    %v373 = vrot.slane %v368, %v372
    %v374 = vlaneseq
    %v375 = vshrl.u32 %v374, 7
    %v376 = vsub.s32 1, %v375
    %v377 = vrot.slane %v368, %v376
    %v378 = vlaneseq
    %v379 = vshrl.u32 %v378, 7
    %v380 = vsub.s32 2, %v379
    %v381 = vrot.slane %v368, %v380
    %v382 = vlaneseq
    %v383 = vshrl.u32 %v382, 7
    %v384 = vsub.s32 3, %v383
    %v385 = vrot.slane %v368, %v384
    %v390 = vadd.f32 %v336, %v373
    %v391 = vadd.f32 %v337, %v377
    %v392 = vadd.f32 %v338, %v381
    %v393 = vadd.f32 %v339, %v385
    %v394 = vadd.f32 %v340, %v373
    %v395 = vadd.f32 %v341, %v377
    %v396 = vadd.f32 %v342, %v381
    %v397 = vadd.f32 %v343, %v385
    %v398 = vadd.f32 %v344, %v373
    %v399 = vadd.f32 %v345, %v377
    %v400 = vadd.f32 %v346, %v381
    %v401 = vadd.f32 %v347, %v385
    %v402 = vadd.f32 %v348, %v373
    %v403 = vadd.f32 %v349, %v377
    %v404 = vadd.f32 %v350, %v381
    %v405 = vadd.f32 %v351, %v385
    %v406 = vadd.f32 %v352, %v373
    %v407 = vadd.f32 %v353, %v377
    %v408 = vadd.f32 %v354, %v381
    %v409 = vadd.f32 %v355, %v385
    %v410 = vadd.f32 %v356, %v373
    %v411 = vadd.f32 %v357, %v377
    %v412 = vadd.f32 %v358, %v381
    %v413 = vadd.f32 %v359, %v385
    %v414 = vadd.f32 %v360, %v373
    %v415 = vadd.f32 %v361, %v377
    %v416 = vadd.f32 %v362, %v381
    %v417 = vadd.f32 %v363, %v385
    %v418 = vadd.f32 %v364, %v373
    %v419 = vadd.f32 %v365, %v377
    %v420 = vadd.f32 %v366, %v381
    %v421 = vadd.f32 %v367, %v385
    %v422 = vmul.f32 %v390, %v93
    %v423 = vmul.f32 %v391, %v94
    %v424 = vmul.f32 %v392, %v95
    %v425 = vmul.f32 %v393, %v96
    %v426 = vmul.f32 %v394, %v93
    %v427 = vmul.f32 %v395, %v94
    %v428 = vmul.f32 %v396, %v95
    %v429 = vmul.f32 %v397, %v96
    %v430 = vmul.f32 %v398, %v93
    %v431 = vmul.f32 %v399, %v94
    %v432 = vmul.f32 %v400, %v95
    %v433 = vmul.f32 %v401, %v96
    %v434 = vmul.f32 %v402, %v93
    %v435 = vmul.f32 %v403, %v94
    %v436 = vmul.f32 %v404, %v95
    %v437 = vmul.f32 %v405, %v96
    %v438 = vmul.f32 %v406, %v93
    %v439 = vmul.f32 %v407, %v94
    %v440 = vmul.f32 %v408, %v95
    %v441 = vmul.f32 %v409, %v96
    %v442 = vmul.f32 %v410, %v93
    %v443 = vmul.f32 %v411, %v94
    %v444 = vmul.f32 %v412, %v95
    %v445 = vmul.f32 %v413, %v96
    %v446 = vmul.f32 %v414, %v93
    %v447 = vmul.f32 %v415, %v94
    %v448 = vmul.f32 %v416, %v95
    %v449 = vmul.f32 %v417, %v96
    %v450 = vmul.f32 %v418, %v93
    %v451 = vmul.f32 %v419, %v94
    %v452 = vmul.f32 %v420, %v95
    %v453 = vmul.f32 %v421, %v96
    %454 = vst [vmem:[#allocation2] sm:$0xff] %v422
    %455 = vst [vmem:[#allocation2 + $0x8] sm:$0xff] %v423
    %456 = vst [vmem:[#allocation2 + $0x10] sm:$0xff] %v424
    %457 = vst [vmem:[#allocation2 + $0x18] sm:$0xff] %v425
    %458 = vst [vmem:[#allocation2 + $0x20] sm:$0xff] %v426
    %459 = vst [vmem:[#allocation2 + $0x28] sm:$0xff] %v427
    %460 = vst [vmem:[#allocation2 + $0x30] sm:$0xff] %v428
    %461 = vst [vmem:[#allocation2 + $0x38] sm:$0xff] %v429
    %462 = vst [vmem:[#allocation2 + $0x40] sm:$0xff] %v430
    %463 = vst [vmem:[#allocation2 + $0x48] sm:$0xff] %v431
    %464 = vst [vmem:[#allocation2 + $0x50] sm:$0xff] %v432
    %465 = vst [vmem:[#allocation2 + $0x58] sm:$0xff] %v433
    %466 = vst [vmem:[#allocation2 + $0x60] sm:$0xff] %v434
    %467 = vst [vmem:[#allocation2 + $0x68] sm:$0xff] %v435
    %468 = vst [vmem:[#allocation2 + $0x70] sm:$0xff] %v436
    %469 = vst [vmem:[#allocation2 + $0x78] sm:$0xff] %v437
    %470 = vst [vmem:[#allocation2 + $0x80] sm:$0xff] %v438
    %471 = vst [vmem:[#allocation2 + $0x88] sm:$0xff] %v439
    %472 = vst [vmem:[#allocation2 + $0x90] sm:$0xff] %v440
    %473 = vst [vmem:[#allocation2 + $0x98] sm:$0xff] %v441
    %474 = vst [vmem:[#allocation2 + $0xa0] sm:$0xff] %v442
    %475 = vst [vmem:[#allocation2 + $0xa8] sm:$0xff] %v443
    %476 = vst [vmem:[#allocation2 + $0xb0] sm:$0xff] %v444
    %477 = vst [vmem:[#allocation2 + $0xb8] sm:$0xff] %v445
    %478 = vst [vmem:[#allocation2 + $0xc0] sm:$0xff] %v446
    %479 = vst [vmem:[#allocation2 + $0xc8] sm:$0xff] %v447
    %480 = vst [vmem:[#allocation2 + $0xd0] sm:$0xff] %v448
    %481 = vst [vmem:[#allocation2 + $0xd8] sm:$0xff] %v449
    %482 = vst [vmem:[#allocation2 + $0xe0] sm:$0xff] %v450
    %483 = vst [vmem:[#allocation2 + $0xe8] sm:$0xff] %v451
    %484 = vst [vmem:[#allocation2 + $0xf0] sm:$0xff] %v452
    %485 = vst [vmem:[#allocation2 + $0xf8] sm:$0xff] %v453
    %v486 = vld [vmem:[#allocation2] sm:$0xff]
    %v487 = vld [vmem:[#allocation2 + $0x8] sm:$0xff]
    %v488 = vld [vmem:[#allocation2 + $0x10] sm:$0xff]
    %v489 = vld [vmem:[#allocation2 + $0x18] sm:$0xff]
    %490 = vmatprep.subr.bf16.mxu0 %v226
    %491 = vmatpush1.bf16.msra.mxu0 %v225
    %492 = vmatprep.subr.bf16.mxu0 %v230
    %493 = vmatpush1.bf16.msra.mxu0 %v229
    %494 = vmatprep.subr.bf16.mxu0 %v234
    %495 = vmatpush1.bf16.msra.mxu0 %v233
    %496 = vmatprep.subr.bf16.mxu0 %v238
    %497 = vmatpush1.bf16.msra.mxu0 %v237
    %498 = vmatprep.subr.bf16.mxu0 %v242
    %499 = vmatpush1.bf16.msra.mxu0 %v241
    %500 = vmatprep.subr.bf16.mxu0 %v246
    %501 = vmatpush1.bf16.msra.mxu0 %v245
    %502 = vmatprep.subr.bf16.mxu0 %v250
    %503 = vmatpush1.bf16.msra.mxu0 %v249
    %504 = vmatprep.subr.bf16.mxu0 %v254
    %505 = vmatpush1.bf16.msra.mxu0 %v253
    %506 = vmatprep.subr.bf16.mxu0 0
    %507 = vmatpush1.bf16.msra.mxu0 0
    %508 = vmatprep.subr.bf16.mxu0 0
    %509 = vmatpush1.bf16.msra.mxu0 0
    %510 = vmatprep.subr.bf16.mxu0 0
    %511 = vmatpush1.bf16.msra.mxu0 0
    %512 = vmatprep.subr.bf16.mxu0 0
    %513 = vmatpush1.bf16.msra.mxu0 0
    %514 = vmatprep.subr.bf16.mxu0 0
    %515 = vmatpush1.bf16.msra.mxu0 0
    %516 = vmatprep.subr.bf16.mxu0 0
    %517 = vmatpush1.bf16.msra.mxu0 0
    %518 = vmatprep.subr.bf16.mxu0 0
    %519 = vmatpush1.bf16.msra.mxu0 0
    %520 = vmatprep.subr.bf16.mxu0 0
    %521 = vmatpush1.bf16.msra.mxu0 0
    %522 = vmatprep.mubr.bf16.mxu0 0
    %523 = vmatmul.mubr.bf16.gmra.mrb[0].mxu0 0
    %v524 = vpop.f32.mrb[0].mxu0
    %v525 = vadd.f32 0.0, %v524
    %v526 = vpop.f32.mrb[0].mxu0
    %v527 = vadd.f32 0.0, %v526
    %v528 = vpop.f32.mrb[0].mxu0
    %v529 = vpop.f32.mrb[0].mxu0
    %530 = vdwg.mxu0
    %531 = vmatprep.subr.bf16.mxu0 %v228
    %532 = vmatpush1.bf16.msra.mxu0 %v227
    %533 = vmatprep.subr.bf16.mxu0 %v232
    %534 = vmatpush1.bf16.msra.mxu0 %v231
    %535 = vmatprep.subr.bf16.mxu0 %v236
    %536 = vmatpush1.bf16.msra.mxu0 %v235
    %537 = vmatprep.subr.bf16.mxu0 %v240
    %538 = vmatpush1.bf16.msra.mxu0 %v239
    %539 = vmatprep.subr.bf16.mxu0 %v244
    %540 = vmatpush1.bf16.msra.mxu0 %v243
    %541 = vmatprep.subr.bf16.mxu0 %v248
    %542 = vmatpush1.bf16.msra.mxu0 %v247
    %543 = vmatprep.subr.bf16.mxu0 %v252
    %544 = vmatpush1.bf16.msra.mxu0 %v251
    %545 = vmatprep.subr.bf16.mxu0 %v256
    %546 = vmatpush1.bf16.msra.mxu0 %v255
    %547 = vmatprep.subr.bf16.mxu0 0
    %548 = vmatpush1.bf16.msra.mxu0 0
    %549 = vmatprep.subr.bf16.mxu0 0
    %550 = vmatpush1.bf16.msra.mxu0 0
    %551 = vmatprep.subr.bf16.mxu0 0
    %552 = vmatpush1.bf16.msra.mxu0 0
    %553 = vmatprep.subr.bf16.mxu0 0
    %554 = vmatpush1.bf16.msra.mxu0 0
    %555 = vmatprep.subr.bf16.mxu0 0
    %556 = vmatpush1.bf16.msra.mxu0 0
    %557 = vmatprep.subr.bf16.mxu0 0
    %558 = vmatpush1.bf16.msra.mxu0 0
    %559 = vmatprep.subr.bf16.mxu0 0
    %560 = vmatpush1.bf16.msra.mxu0 0
    %561 = vmatprep.subr.bf16.mxu0 0
    %562 = vmatpush1.bf16.msra.mxu0 0
    %563 = vmatprep.mubr.bf16.mxu0 0
    %564 = vmatmul.mubr.bf16.gmra.mrb[0].mxu0 0
    %v565 = vpop.f32.mrb[0].mxu0
    %v566 = vadd.f32 0.0, %v565
    %v567 = vpop.f32.mrb[0].mxu0
    %v568 = vadd.f32 0.0, %v567
    %v569 = vpop.f32.mrb[0].mxu0
    %v570 = vpop.f32.mrb[0].mxu0
    %571 = vdwg.mxu0
    %v572 = vadd.f32 %v486, %v525
    %v573 = vadd.f32 %v487, %v527
    %v574 = vadd.f32 %v488, %v566
    %v575 = vadd.f32 %v489, %v568
    %v576 = vtanh.pop %v572
    %v577 = vtanh.pop %v573
    %v578 = vtanh.pop %v574
    %v579 = vtanh.pop %v575
    %v580 = vadd.f32 %v576, 1.0
    %v581 = vmul.f32 %v580, 0.5
    %v582 = vadd.f32 %v577, 1.0
    %v583 = vmul.f32 %v582, 0.5
    %v584 = vadd.f32 %v579, 1.0
    %v585 = vmul.f32 %v584, 0.5
    %v586 = vmul.f32 %v583, 0.0
    %v587 = vmul.f32 %v581, %v578
    %v588 = vadd.f32 %v586, %v587
    %v589 = vtanh.pop %v588
    %v590 = vmul.f32 %v585, %v589
    %s591 = scalar_lea.vmem [#allocation2], 32
    %v592 = vld [vmem:[%s591] sm:$0xff]
    %v593 = vld [vmem:[%s591 + $0x8] sm:$0xff]
    %v594 = vld [vmem:[%s591 + $0x10] sm:$0xff]
    %v595 = vld [vmem:[%s591 + $0x18] sm:$0xff]
    %v596 = vpack.c.bf16 %v590, %v590
    %597 = vmatprep.subr.bf16.mxu0 %v226
    %598 = vmatpush1.bf16.msra.mxu0 %v225
    %599 = vmatprep.subr.bf16.mxu0 %v230
    %600 = vmatpush1.bf16.msra.mxu0 %v229
    %601 = vmatprep.subr.bf16.mxu0 %v234
    %602 = vmatpush1.bf16.msra.mxu0 %v233
    %603 = vmatprep.subr.bf16.mxu0 %v238
    %604 = vmatpush1.bf16.msra.mxu0 %v237
    %605 = vmatprep.subr.bf16.mxu0 %v242
    %606 = vmatpush1.bf16.msra.mxu0 %v241
    %607 = vmatprep.subr.bf16.mxu0 %v246
    %608 = vmatpush1.bf16.msra.mxu0 %v245
    %609 = vmatprep.subr.bf16.mxu0 %v250
    %610 = vmatpush1.bf16.msra.mxu0 %v249
    %611 = vmatprep.subr.bf16.mxu0 %v254
    %612 = vmatpush1.bf16.msra.mxu0 %v253
    %613 = vmatprep.subr.bf16.mxu0 0
    %614 = vmatpush1.bf16.msra.mxu0 0
    %615 = vmatprep.subr.bf16.mxu0 0
    %616 = vmatpush1.bf16.msra.mxu0 0
    %617 = vmatprep.subr.bf16.mxu0 0
    %618 = vmatpush1.bf16.msra.mxu0 0
    %619 = vmatprep.subr.bf16.mxu0 0
    %620 = vmatpush1.bf16.msra.mxu0 0
    %621 = vmatprep.subr.bf16.mxu0 0
    %622 = vmatpush1.bf16.msra.mxu0 0
    %623 = vmatprep.subr.bf16.mxu0 0
    %624 = vmatpush1.bf16.msra.mxu0 0
    %625 = vmatprep.subr.bf16.mxu0 0
    %626 = vmatpush1.bf16.msra.mxu0 0
    %627 = vmatprep.subr.bf16.mxu0 0
    %628 = vmatpush1.bf16.msra.mxu0 0
    %629 = vmatprep.mubr.bf16.mxu0 0
    %630 = vmatmul.mubr.bf16.gmra.mrb[0].mxu0 %v596
    %v631 = vpop.f32.mrb[0].mxu0
    %v632 = vadd.f32 0.0, %v631
    %v633 = vpop.f32.mrb[0].mxu0
    %v634 = vadd.f32 0.0, %v633
    %v635 = vpop.f32.mrb[0].mxu0
    %v636 = vpop.f32.mrb[0].mxu0
    %637 = vdwg.mxu0
    %638 = vmatprep.subr.bf16.mxu0 %v228
    %639 = vmatpush1.bf16.msra.mxu0 %v227
    %640 = vmatprep.subr.bf16.mxu0 %v232
    %641 = vmatpush1.bf16.msra.mxu0 %v231
    %642 = vmatprep.subr.bf16.mxu0 %v236
    %643 = vmatpush1.bf16.msra.mxu0 %v235
    %644 = vmatprep.subr.bf16.mxu0 %v240
    %645 = vmatpush1.bf16.msra.mxu0 %v239
    %646 = vmatprep.subr.bf16.mxu0 %v244
    %647 = vmatpush1.bf16.msra.mxu0 %v243
    %648 = vmatprep.subr.bf16.mxu0 %v248
    %649 = vmatpush1.bf16.msra.mxu0 %v247
    %650 = vmatprep.subr.bf16.mxu0 %v252
    %651 = vmatpush1.bf16.msra.mxu0 %v251
    %652 = vmatprep.subr.bf16.mxu0 %v256
    %653 = vmatpush1.bf16.msra.mxu0 %v255
    %654 = vmatprep.subr.bf16.mxu0 0
    %655 = vmatpush1.bf16.msra.mxu0 0
    %656 = vmatprep.subr.bf16.mxu0 0
    %657 = vmatpush1.bf16.msra.mxu0 0
    %658 = vmatprep.subr.bf16.mxu0 0
    %659 = vmatpush1.bf16.msra.mxu0 0
    %660 = vmatprep.subr.bf16.mxu0 0
    %661 = vmatpush1.bf16.msra.mxu0 0
    %662 = vmatprep.subr.bf16.mxu0 0
    %663 = vmatpush1.bf16.msra.mxu0 0
    %664 = vmatprep.subr.bf16.mxu0 0
    %665 = vmatpush1.bf16.msra.mxu0 0
    %666 = vmatprep.subr.bf16.mxu0 0
    %667 = vmatpush1.bf16.msra.mxu0 0
    %668 = vmatprep.subr.bf16.mxu0 0
    %669 = vmatpush1.bf16.msra.mxu0 0
    %670 = vmatprep.mubr.bf16.mxu0 0
    %671 = vmatmul.mubr.bf16.gmra.mrb[0].mxu0 %v596
    %v672 = vpop.f32.mrb[0].mxu0
    %v673 = vadd.f32 0.0, %v672
    %v674 = vpop.f32.mrb[0].mxu0
    %v675 = vadd.f32 0.0, %v674
    %v676 = vpop.f32.mrb[0].mxu0
    %v677 = vpop.f32.mrb[0].mxu0
    %678 = vdwg.mxu0
    %v679 = vadd.f32 %v592, %v632
    %v680 = vadd.f32 %v593, %v634
    %v681 = vadd.f32 %v594, %v673
    %v682 = vadd.f32 %v595, %v675
    %v683 = vtanh.pop %v679
    %v684 = vtanh.pop %v680
    %v685 = vtanh.pop %v681
    %v686 = vtanh.pop %v682
    %v687 = vadd.f32 %v683, 1.0
    %v688 = vmul.f32 %v687, 0.5
    %v689 = vadd.f32 %v684, 1.0
    %v690 = vmul.f32 %v689, 0.5
    %v691 = vadd.f32 %v686, 1.0
    %v692 = vmul.f32 %v691, 0.5
    %v693 = vmul.f32 %v690, %v588
    %v694 = vmul.f32 %v688, %v685
    %v695 = vadd.f32 %v693, %v694
    %v696 = vtanh.pop %v695
    %v697 = vmul.f32 %v692, %v696
    %s698 = scalar_lea.vmem [#allocation2], 64
    %v699 = vld [vmem:[%s698] sm:$0xff]
    %v700 = vld [vmem:[%s698 + $0x8] sm:$0xff]
    %v701 = vld [vmem:[%s698 + $0x10] sm:$0xff]
    %v702 = vld [vmem:[%s698 + $0x18] sm:$0xff]
    %v703 = vpack.c.bf16 %v697, %v697
    %704 = vmatprep.subr.bf16.mxu0 %v226
    %705 = vmatpush1.bf16.msra.mxu0 %v225
    %706 = vmatprep.subr.bf16.mxu0 %v230
    %707 = vmatpush1.bf16.msra.mxu0 %v229
    %708 = vmatprep.subr.bf16.mxu0 %v234
    %709 = vmatpush1.bf16.msra.mxu0 %v233
    %710 = vmatprep.subr.bf16.mxu0 %v238
    %711 = vmatpush1.bf16.msra.mxu0 %v237
    %712 = vmatprep.subr.bf16.mxu0 %v242
    %713 = vmatpush1.bf16.msra.mxu0 %v241
    %714 = vmatprep.subr.bf16.mxu0 %v246
    %715 = vmatpush1.bf16.msra.mxu0 %v245
    %716 = vmatprep.subr.bf16.mxu0 %v250
    %717 = vmatpush1.bf16.msra.mxu0 %v249
    %718 = vmatprep.subr.bf16.mxu0 %v254
    %719 = vmatpush1.bf16.msra.mxu0 %v253
    %720 = vmatprep.subr.bf16.mxu0 0
    %721 = vmatpush1.bf16.msra.mxu0 0
    %722 = vmatprep.subr.bf16.mxu0 0
    %723 = vmatpush1.bf16.msra.mxu0 0
    %724 = vmatprep.subr.bf16.mxu0 0
    %725 = vmatpush1.bf16.msra.mxu0 0
    %726 = vmatprep.subr.bf16.mxu0 0
    %727 = vmatpush1.bf16.msra.mxu0 0
    %728 = vmatprep.subr.bf16.mxu0 0
    %729 = vmatpush1.bf16.msra.mxu0 0
    %730 = vmatprep.subr.bf16.mxu0 0
    %731 = vmatpush1.bf16.msra.mxu0 0
    %732 = vmatprep.subr.bf16.mxu0 0
    %733 = vmatpush1.bf16.msra.mxu0 0
    %734 = vmatprep.subr.bf16.mxu0 0
    %735 = vmatpush1.bf16.msra.mxu0 0
    %736 = vmatprep.mubr.bf16.mxu0 0
    %737 = vmatmul.mubr.bf16.gmra.mrb[0].mxu0 %v703
    %v738 = vpop.f32.mrb[0].mxu0
    %v739 = vadd.f32 0.0, %v738
    %v740 = vpop.f32.mrb[0].mxu0
    %v741 = vadd.f32 0.0, %v740
    %v742 = vpop.f32.mrb[0].mxu0
    %v743 = vpop.f32.mrb[0].mxu0
    %744 = vdwg.mxu0
    %745 = vmatprep.subr.bf16.mxu0 %v228
    %746 = vmatpush1.bf16.msra.mxu0 %v227
    %747 = vmatprep.subr.bf16.mxu0 %v232
    %748 = vmatpush1.bf16.msra.mxu0 %v231
    %749 = vmatprep.subr.bf16.mxu0 %v236
    %750 = vmatpush1.bf16.msra.mxu0 %v235
    %751 = vmatprep.subr.bf16.mxu0 %v240
    %752 = vmatpush1.bf16.msra.mxu0 %v239
    %753 = vmatprep.subr.bf16.mxu0 %v244
    %754 = vmatpush1.bf16.msra.mxu0 %v243
    %755 = vmatprep.subr.bf16.mxu0 %v248
    %756 = vmatpush1.bf16.msra.mxu0 %v247
    %757 = vmatprep.subr.bf16.mxu0 %v252
    %758 = vmatpush1.bf16.msra.mxu0 %v251
    %759 = vmatprep.subr.bf16.mxu0 %v256
    %760 = vmatpush1.bf16.msra.mxu0 %v255
    %761 = vmatprep.subr.bf16.mxu0 0
    %762 = vmatpush1.bf16.msra.mxu0 0
    %763 = vmatprep.subr.bf16.mxu0 0
    %764 = vmatpush1.bf16.msra.mxu0 0
    %765 = vmatprep.subr.bf16.mxu0 0
    %766 = vmatpush1.bf16.msra.mxu0 0
    %767 = vmatprep.subr.bf16.mxu0 0
    %768 = vmatpush1.bf16.msra.mxu0 0
    %769 = vmatprep.subr.bf16.mxu0 0
    %770 = vmatpush1.bf16.msra.mxu0 0
    %771 = vmatprep.subr.bf16.mxu0 0
    %772 = vmatpush1.bf16.msra.mxu0 0
    %773 = vmatprep.subr.bf16.mxu0 0
    %774 = vmatpush1.bf16.msra.mxu0 0
    %775 = vmatprep.subr.bf16.mxu0 0
    %776 = vmatpush1.bf16.msra.mxu0 0
    %777 = vmatprep.mubr.bf16.mxu0 0
    %778 = vmatmul.mubr.bf16.gmra.mrb[0].mxu0 %v703
    %v779 = vpop.f32.mrb[0].mxu0
    %v780 = vadd.f32 0.0, %v779
    %v781 = vpop.f32.mrb[0].mxu0
    %v782 = vadd.f32 0.0, %v781
    %v783 = vpop.f32.mrb[0].mxu0
    %v784 = vpop.f32.mrb[0].mxu0
    %785 = vdwg.mxu0
    %v786 = vadd.f32 %v699, %v739
    %v787 = vadd.f32 %v700, %v741
    %v788 = vadd.f32 %v701, %v780
    %v789 = vadd.f32 %v702, %v782
    %v790 = vtanh.pop %v786
    %v791 = vtanh.pop %v787
    %v792 = vtanh.pop %v788
    %v793 = vtanh.pop %v789
    %v794 = vadd.f32 %v790, 1.0
    %v795 = vmul.f32 %v794, 0.5
    %v796 = vadd.f32 %v791, 1.0
    %v797 = vmul.f32 %v796, 0.5
    %v798 = vadd.f32 %v793, 1.0
    %v799 = vmul.f32 %v798, 0.5
    %v800 = vmul.f32 %v797, %v695
    %v801 = vmul.f32 %v795, %v792
    %v802 = vadd.f32 %v800, %v801
    %v803 = vtanh.pop %v802
    %v804 = vmul.f32 %v799, %v803
    %s805 = scalar_lea.vmem [#allocation2], 96
    %v806 = vld [vmem:[%s805] sm:$0xff]
    %v807 = vld [vmem:[%s805 + $0x8] sm:$0xff]
    %v808 = vld [vmem:[%s805 + $0x10] sm:$0xff]
    %v809 = vld [vmem:[%s805 + $0x18] sm:$0xff]
    %v810 = vpack.c.bf16 %v804, %v804
    %811 = vmatprep.subr.bf16.mxu0 %v226
    %812 = vmatpush1.bf16.msra.mxu0 %v225
    %813 = vmatprep.subr.bf16.mxu0 %v230
    %814 = vmatpush1.bf16.msra.mxu0 %v229
    %815 = vmatprep.subr.bf16.mxu0 %v234
    %816 = vmatpush1.bf16.msra.mxu0 %v233
    %817 = vmatprep.subr.bf16.mxu0 %v238
    %818 = vmatpush1.bf16.msra.mxu0 %v237
    %819 = vmatprep.subr.bf16.mxu0 %v242
    %820 = vmatpush1.bf16.msra.mxu0 %v241
    %821 = vmatprep.subr.bf16.mxu0 %v246
    %822 = vmatpush1.bf16.msra.mxu0 %v245
    %823 = vmatprep.subr.bf16.mxu0 %v250
    %824 = vmatpush1.bf16.msra.mxu0 %v249
    %825 = vmatprep.subr.bf16.mxu0 %v254
    %826 = vmatpush1.bf16.msra.mxu0 %v253
    %827 = vmatprep.subr.bf16.mxu0 0
    %828 = vmatpush1.bf16.msra.mxu0 0
    %829 = vmatprep.subr.bf16.mxu0 0
    %830 = vmatpush1.bf16.msra.mxu0 0
    %831 = vmatprep.subr.bf16.mxu0 0
    %832 = vmatpush1.bf16.msra.mxu0 0
    %833 = vmatprep.subr.bf16.mxu0 0
    %834 = vmatpush1.bf16.msra.mxu0 0
    %835 = vmatprep.subr.bf16.mxu0 0
    %836 = vmatpush1.bf16.msra.mxu0 0
    %837 = vmatprep.subr.bf16.mxu0 0
    %838 = vmatpush1.bf16.msra.mxu0 0
    %839 = vmatprep.subr.bf16.mxu0 0
    %840 = vmatpush1.bf16.msra.mxu0 0
    %841 = vmatprep.subr.bf16.mxu0 0
    %842 = vmatpush1.bf16.msra.mxu0 0
    %843 = vmatprep.mubr.bf16.mxu0 0
    %844 = vmatmul.mubr.bf16.gmra.mrb[0].mxu0 %v810
    %v845 = vpop.f32.mrb[0].mxu0
    %v846 = vadd.f32 0.0, %v845
    %v847 = vpop.f32.mrb[0].mxu0
    %v848 = vadd.f32 0.0, %v847
    %v849 = vpop.f32.mrb[0].mxu0
    %v850 = vpop.f32.mrb[0].mxu0
    %851 = vdwg.mxu0
    %852 = vmatprep.subr.bf16.mxu0 %v228
    %853 = vmatpush1.bf16.msra.mxu0 %v227
    %854 = vmatprep.subr.bf16.mxu0 %v232
    %855 = vmatpush1.bf16.msra.mxu0 %v231
    %856 = vmatprep.subr.bf16.mxu0 %v236
    %857 = vmatpush1.bf16.msra.mxu0 %v235
    %858 = vmatprep.subr.bf16.mxu0 %v240
    %859 = vmatpush1.bf16.msra.mxu0 %v239
    %860 = vmatprep.subr.bf16.mxu0 %v244
    %861 = vmatpush1.bf16.msra.mxu0 %v243
    %862 = vmatprep.subr.bf16.mxu0 %v248
    %863 = vmatpush1.bf16.msra.mxu0 %v247
    %864 = vmatprep.subr.bf16.mxu0 %v252
    %865 = vmatpush1.bf16.msra.mxu0 %v251
    %866 = vmatprep.subr.bf16.mxu0 %v256
    %867 = vmatpush1.bf16.msra.mxu0 %v255
    %868 = vmatprep.subr.bf16.mxu0 0
    %869 = vmatpush1.bf16.msra.mxu0 0
    %870 = vmatprep.subr.bf16.mxu0 0
    %871 = vmatpush1.bf16.msra.mxu0 0
    %872 = vmatprep.subr.bf16.mxu0 0
    %873 = vmatpush1.bf16.msra.mxu0 0
    %874 = vmatprep.subr.bf16.mxu0 0
    %875 = vmatpush1.bf16.msra.mxu0 0
    %876 = vmatprep.subr.bf16.mxu0 0
    %877 = vmatpush1.bf16.msra.mxu0 0
    %878 = vmatprep.subr.bf16.mxu0 0
    %879 = vmatpush1.bf16.msra.mxu0 0
    %880 = vmatprep.subr.bf16.mxu0 0
    %881 = vmatpush1.bf16.msra.mxu0 0
    %882 = vmatprep.subr.bf16.mxu0 0
    %883 = vmatpush1.bf16.msra.mxu0 0
    %884 = vmatprep.mubr.bf16.mxu0 0
    %885 = vmatmul.mubr.bf16.gmra.mrb[0].mxu0 %v810
    %v886 = vpop.f32.mrb[0].mxu0
    %v887 = vadd.f32 0.0, %v886
    %v888 = vpop.f32.mrb[0].mxu0
    %v889 = vadd.f32 0.0, %v888
    %v890 = vpop.f32.mrb[0].mxu0
    %v891 = vpop.f32.mrb[0].mxu0
    %892 = vdwg.mxu0
    %v893 = vadd.f32 %v806, %v846
    %v894 = vadd.f32 %v807, %v848
    %v895 = vadd.f32 %v808, %v887
    %v896 = vadd.f32 %v809, %v889
    %v897 = vtanh.pop %v893
    %v898 = vtanh.pop %v894
    %v899 = vtanh.pop %v895
    %v900 = vtanh.pop %v896
    %v901 = vadd.f32 %v897, 1.0
    %v902 = vmul.f32 %v901, 0.5
    %v903 = vadd.f32 %v898, 1.0
    %v904 = vmul.f32 %v903, 0.5
    %v905 = vadd.f32 %v900, 1.0
    %v906 = vmul.f32 %v905, 0.5
    %v907 = vmul.f32 %v904, %v802
    %v908 = vmul.f32 %v902, %v899
    %v909 = vadd.f32 %v907, %v908
    %v910 = vtanh.pop %v909
    %v911 = vmul.f32 %v906, %v910
    %s912 = scalar_lea.vmem [#allocation2], 128
    %v913 = vld [vmem:[%s912] sm:$0xff]
    %v914 = vld [vmem:[%s912 + $0x8] sm:$0xff]
    %v915 = vld [vmem:[%s912 + $0x10] sm:$0xff]
    %v916 = vld [vmem:[%s912 + $0x18] sm:$0xff]
    %v917 = vpack.c.bf16 %v911, %v911
    %918 = vmatprep.subr.bf16.mxu0 %v226
    %919 = vmatpush1.bf16.msra.mxu0 %v225
    %920 = vmatprep.subr.bf16.mxu0 %v230
    %921 = vmatpush1.bf16.msra.mxu0 %v229
    %922 = vmatprep.subr.bf16.mxu0 %v234
    %923 = vmatpush1.bf16.msra.mxu0 %v233
    %924 = vmatprep.subr.bf16.mxu0 %v238
    %925 = vmatpush1.bf16.msra.mxu0 %v237
    %926 = vmatprep.subr.bf16.mxu0 %v242
    %927 = vmatpush1.bf16.msra.mxu0 %v241
    %928 = vmatprep.subr.bf16.mxu0 %v246
    %929 = vmatpush1.bf16.msra.mxu0 %v245
    %930 = vmatprep.subr.bf16.mxu0 %v250
    %931 = vmatpush1.bf16.msra.mxu0 %v249
    %932 = vmatprep.subr.bf16.mxu0 %v254
    %933 = vmatpush1.bf16.msra.mxu0 %v253
    %934 = vmatprep.subr.bf16.mxu0 0
    %935 = vmatpush1.bf16.msra.mxu0 0
    %936 = vmatprep.subr.bf16.mxu0 0
    %937 = vmatpush1.bf16.msra.mxu0 0
    %938 = vmatprep.subr.bf16.mxu0 0
    %939 = vmatpush1.bf16.msra.mxu0 0
    %940 = vmatprep.subr.bf16.mxu0 0
    %941 = vmatpush1.bf16.msra.mxu0 0
    %942 = vmatprep.subr.bf16.mxu0 0
    %943 = vmatpush1.bf16.msra.mxu0 0
    %944 = vmatprep.subr.bf16.mxu0 0
    %945 = vmatpush1.bf16.msra.mxu0 0
    %946 = vmatprep.subr.bf16.mxu0 0
    %947 = vmatpush1.bf16.msra.mxu0 0
    %948 = vmatprep.subr.bf16.mxu0 0
    %949 = vmatpush1.bf16.msra.mxu0 0
    %950 = vmatprep.mubr.bf16.mxu0 0
    %951 = vmatmul.mubr.bf16.gmra.mrb[0].mxu0 %v917
    %v952 = vpop.f32.mrb[0].mxu0
    %v953 = vadd.f32 0.0, %v952
    %v954 = vpop.f32.mrb[0].mxu0
    %v955 = vadd.f32 0.0, %v954
    %v956 = vpop.f32.mrb[0].mxu0
    %v957 = vpop.f32.mrb[0].mxu0
    %958 = vdwg.mxu0
    %959 = vmatprep.subr.bf16.mxu0 %v228
    %960 = vmatpush1.bf16.msra.mxu0 %v227
    %961 = vmatprep.subr.bf16.mxu0 %v232
    %962 = vmatpush1.bf16.msra.mxu0 %v231
    %963 = vmatprep.subr.bf16.mxu0 %v236
    %964 = vmatpush1.bf16.msra.mxu0 %v235
    %965 = vmatprep.subr.bf16.mxu0 %v240
    %966 = vmatpush1.bf16.msra.mxu0 %v239
    %967 = vmatprep.subr.bf16.mxu0 %v244
    %968 = vmatpush1.bf16.msra.mxu0 %v243
    %969 = vmatprep.subr.bf16.mxu0 %v248
    %970 = vmatpush1.bf16.msra.mxu0 %v247
    %971 = vmatprep.subr.bf16.mxu0 %v252
    %972 = vmatpush1.bf16.msra.mxu0 %v251
    %973 = vmatprep.subr.bf16.mxu0 %v256
    %974 = vmatpush1.bf16.msra.mxu0 %v255
    %975 = vmatprep.subr.bf16.mxu0 0
    %976 = vmatpush1.bf16.msra.mxu0 0
    %977 = vmatprep.subr.bf16.mxu0 0
    %978 = vmatpush1.bf16.msra.mxu0 0
    %979 = vmatprep.subr.bf16.mxu0 0
    %980 = vmatpush1.bf16.msra.mxu0 0
    %981 = vmatprep.subr.bf16.mxu0 0
    %982 = vmatpush1.bf16.msra.mxu0 0
    %983 = vmatprep.subr.bf16.mxu0 0
    %984 = vmatpush1.bf16.msra.mxu0 0
    %985 = vmatprep.subr.bf16.mxu0 0
    %986 = vmatpush1.bf16.msra.mxu0 0
    %987 = vmatprep.subr.bf16.mxu0 0
    %988 = vmatpush1.bf16.msra.mxu0 0
    %989 = vmatprep.subr.bf16.mxu0 0
    %990 = vmatpush1.bf16.msra.mxu0 0
    %991 = vmatprep.mubr.bf16.mxu0 0
    %992 = vmatmul.mubr.bf16.gmra.mrb[0].mxu0 %v917
    %v993 = vpop.f32.mrb[0].mxu0
    %v994 = vadd.f32 0.0, %v993
    %v995 = vpop.f32.mrb[0].mxu0
    %v996 = vadd.f32 0.0, %v995
    %v997 = vpop.f32.mrb[0].mxu0
    %v998 = vpop.f32.mrb[0].mxu0
    %999 = vdwg.mxu0
    %v1000 = vadd.f32 %v913, %v953
    %v1001 = vadd.f32 %v914, %v955
    %v1002 = vadd.f32 %v915, %v994
    %v1003 = vadd.f32 %v916, %v996
    %v1004 = vtanh.pop %v1000
    %v1005 = vtanh.pop %v1001
    %v1006 = vtanh.pop %v1002
    %v1007 = vtanh.pop %v1003
    %v1008 = vadd.f32 %v1004, 1.0
    %v1009 = vmul.f32 %v1008, 0.5
    %v1010 = vadd.f32 %v1005, 1.0
    %v1011 = vmul.f32 %v1010, 0.5
    %v1012 = vadd.f32 %v1007, 1.0
    %v1013 = vmul.f32 %v1012, 0.5
    %v1014 = vmul.f32 %v1011, %v909
    %v1015 = vmul.f32 %v1009, %v1006
    %v1016 = vadd.f32 %v1014, %v1015
    %v1017 = vtanh.pop %v1016
    %v1018 = vmul.f32 %v1013, %v1017
    %s1019 = scalar_lea.vmem [#allocation2], 160
    %v1020 = vld [vmem:[%s1019] sm:$0xff]
    %v1021 = vld [vmem:[%s1019 + $0x8] sm:$0xff]
    %v1022 = vld [vmem:[%s1019 + $0x10] sm:$0xff]
    %v1023 = vld [vmem:[%s1019 + $0x18] sm:$0xff]
    %v1024 = vpack.c.bf16 %v1018, %v1018
    %1025 = vmatprep.subr.bf16.mxu0 %v226
    %1026 = vmatpush1.bf16.msra.mxu0 %v225
    %1027 = vmatprep.subr.bf16.mxu0 %v230
    %1028 = vmatpush1.bf16.msra.mxu0 %v229
    %1029 = vmatprep.subr.bf16.mxu0 %v234
    %1030 = vmatpush1.bf16.msra.mxu0 %v233
    %1031 = vmatprep.subr.bf16.mxu0 %v238
    %1032 = vmatpush1.bf16.msra.mxu0 %v237
    %1033 = vmatprep.subr.bf16.mxu0 %v242
    %1034 = vmatpush1.bf16.msra.mxu0 %v241
    %1035 = vmatprep.subr.bf16.mxu0 %v246
    %1036 = vmatpush1.bf16.msra.mxu0 %v245
    %1037 = vmatprep.subr.bf16.mxu0 %v250
    %1038 = vmatpush1.bf16.msra.mxu0 %v249
    %1039 = vmatprep.subr.bf16.mxu0 %v254
    %1040 = vmatpush1.bf16.msra.mxu0 %v253
    %1041 = vmatprep.subr.bf16.mxu0 0
    %1042 = vmatpush1.bf16.msra.mxu0 0
    %1043 = vmatprep.subr.bf16.mxu0 0
    %1044 = vmatpush1.bf16.msra.mxu0 0
    %1045 = vmatprep.subr.bf16.mxu0 0
    %1046 = vmatpush1.bf16.msra.mxu0 0
    %1047 = vmatprep.subr.bf16.mxu0 0
    %1048 = vmatpush1.bf16.msra.mxu0 0
    %1049 = vmatprep.subr.bf16.mxu0 0
    %1050 = vmatpush1.bf16.msra.mxu0 0
    %1051 = vmatprep.subr.bf16.mxu0 0
    %1052 = vmatpush1.bf16.msra.mxu0 0
    %1053 = vmatprep.subr.bf16.mxu0 0
    %1054 = vmatpush1.bf16.msra.mxu0 0
    %1055 = vmatprep.subr.bf16.mxu0 0
    %1056 = vmatpush1.bf16.msra.mxu0 0
    %1057 = vmatprep.mubr.bf16.mxu0 0
    %1058 = vmatmul.mubr.bf16.gmra.mrb[0].mxu0 %v1024
    %v1059 = vpop.f32.mrb[0].mxu0
    %v1060 = vadd.f32 0.0, %v1059
    %v1061 = vpop.f32.mrb[0].mxu0
    %v1062 = vadd.f32 0.0, %v1061
    %v1063 = vpop.f32.mrb[0].mxu0
    %v1064 = vpop.f32.mrb[0].mxu0
    %1065 = vdwg.mxu0
    %1066 = vmatprep.subr.bf16.mxu0 %v228
    %1067 = vmatpush1.bf16.msra.mxu0 %v227
    %1068 = vmatprep.subr.bf16.mxu0 %v232
    %1069 = vmatpush1.bf16.msra.mxu0 %v231
    %1070 = vmatprep.subr.bf16.mxu0 %v236
    %1071 = vmatpush1.bf16.msra.mxu0 %v235
    %1072 = vmatprep.subr.bf16.mxu0 %v240
    %1073 = vmatpush1.bf16.msra.mxu0 %v239
    %1074 = vmatprep.subr.bf16.mxu0 %v244
    %1075 = vmatpush1.bf16.msra.mxu0 %v243
    %1076 = vmatprep.subr.bf16.mxu0 %v248
    %1077 = vmatpush1.bf16.msra.mxu0 %v247
    %1078 = vmatprep.subr.bf16.mxu0 %v252
    %1079 = vmatpush1.bf16.msra.mxu0 %v251
    %1080 = vmatprep.subr.bf16.mxu0 %v256
    %1081 = vmatpush1.bf16.msra.mxu0 %v255
    %1082 = vmatprep.subr.bf16.mxu0 0
    %1083 = vmatpush1.bf16.msra.mxu0 0
    %1084 = vmatprep.subr.bf16.mxu0 0
    %1085 = vmatpush1.bf16.msra.mxu0 0
    %1086 = vmatprep.subr.bf16.mxu0 0
    %1087 = vmatpush1.bf16.msra.mxu0 0
    %1088 = vmatprep.subr.bf16.mxu0 0
    %1089 = vmatpush1.bf16.msra.mxu0 0
    %1090 = vmatprep.subr.bf16.mxu0 0
    %1091 = vmatpush1.bf16.msra.mxu0 0
    %1092 = vmatprep.subr.bf16.mxu0 0
    %1093 = vmatpush1.bf16.msra.mxu0 0
    %1094 = vmatprep.subr.bf16.mxu0 0
    %1095 = vmatpush1.bf16.msra.mxu0 0
    %1096 = vmatprep.subr.bf16.mxu0 0
    %1097 = vmatpush1.bf16.msra.mxu0 0
    %1098 = vmatprep.mubr.bf16.mxu0 0
    %1099 = vmatmul.mubr.bf16.gmra.mrb[0].mxu0 %v1024
    %v1100 = vpop.f32.mrb[0].mxu0
    %v1101 = vadd.f32 0.0, %v1100
    %v1102 = vpop.f32.mrb[0].mxu0
    %v1103 = vadd.f32 0.0, %v1102
    %v1104 = vpop.f32.mrb[0].mxu0
    %v1105 = vpop.f32.mrb[0].mxu0
    %1106 = vdwg.mxu0
    %v1107 = vadd.f32 %v1020, %v1060
    %v1108 = vadd.f32 %v1021, %v1062
    %v1109 = vadd.f32 %v1022, %v1101
    %v1110 = vadd.f32 %v1023, %v1103
    %v1111 = vtanh.pop %v1107
    %v1112 = vtanh.pop %v1108
    %v1113 = vtanh.pop %v1109
    %v1114 = vtanh.pop %v1110
    %v1115 = vadd.f32 %v1111, 1.0
    %v1116 = vmul.f32 %v1115, 0.5
    %v1117 = vadd.f32 %v1112, 1.0
    %v1118 = vmul.f32 %v1117, 0.5
    %v1119 = vadd.f32 %v1114, 1.0
    %v1120 = vmul.f32 %v1119, 0.5
    %v1121 = vmul.f32 %v1118, %v1016
    %v1122 = vmul.f32 %v1116, %v1113
    %v1123 = vadd.f32 %v1121, %v1122
    %v1124 = vtanh.pop %v1123
    %v1125 = vmul.f32 %v1120, %v1124
    %s1126 = scalar_lea.vmem [#allocation2], 192
    %v1127 = vld [vmem:[%s1126] sm:$0xff]
    %v1128 = vld [vmem:[%s1126 + $0x8] sm:$0xff]
    %v1129 = vld [vmem:[%s1126 + $0x10] sm:$0xff]
    %v1130 = vld [vmem:[%s1126 + $0x18] sm:$0xff]
    %v1131 = vpack.c.bf16 %v1125, %v1125
    %1132 = vmatprep.subr.bf16.mxu0 %v226
    %1133 = vmatpush1.bf16.msra.mxu0 %v225
    %1134 = vmatprep.subr.bf16.mxu0 %v230
    %1135 = vmatpush1.bf16.msra.mxu0 %v229
    %1136 = vmatprep.subr.bf16.mxu0 %v234
    %1137 = vmatpush1.bf16.msra.mxu0 %v233
    %1138 = vmatprep.subr.bf16.mxu0 %v238
    %1139 = vmatpush1.bf16.msra.mxu0 %v237
    %1140 = vmatprep.subr.bf16.mxu0 %v242
    %1141 = vmatpush1.bf16.msra.mxu0 %v241
    %1142 = vmatprep.subr.bf16.mxu0 %v246
    %1143 = vmatpush1.bf16.msra.mxu0 %v245
    %1144 = vmatprep.subr.bf16.mxu0 %v250
    %1145 = vmatpush1.bf16.msra.mxu0 %v249
    %1146 = vmatprep.subr.bf16.mxu0 %v254
    %1147 = vmatpush1.bf16.msra.mxu0 %v253
    %1148 = vmatprep.subr.bf16.mxu0 0
    %1149 = vmatpush1.bf16.msra.mxu0 0
    %1150 = vmatprep.subr.bf16.mxu0 0
    %1151 = vmatpush1.bf16.msra.mxu0 0
    %1152 = vmatprep.subr.bf16.mxu0 0
    %1153 = vmatpush1.bf16.msra.mxu0 0
    %1154 = vmatprep.subr.bf16.mxu0 0
    %1155 = vmatpush1.bf16.msra.mxu0 0
    %1156 = vmatprep.subr.bf16.mxu0 0
    %1157 = vmatpush1.bf16.msra.mxu0 0
    %1158 = vmatprep.subr.bf16.mxu0 0
    %1159 = vmatpush1.bf16.msra.mxu0 0
    %1160 = vmatprep.subr.bf16.mxu0 0
    %1161 = vmatpush1.bf16.msra.mxu0 0
    %1162 = vmatprep.subr.bf16.mxu0 0
    %1163 = vmatpush1.bf16.msra.mxu0 0
    %1164 = vmatprep.mubr.bf16.mxu0 0
    %1165 = vmatmul.mubr.bf16.gmra.mrb[0].mxu0 %v1131
    %v1166 = vpop.f32.mrb[0].mxu0
    %v1167 = vadd.f32 0.0, %v1166
    %v1168 = vpop.f32.mrb[0].mxu0
    %v1169 = vadd.f32 0.0, %v1168
    %v1170 = vpop.f32.mrb[0].mxu0
    %v1171 = vpop.f32.mrb[0].mxu0
    %1172 = vdwg.mxu0
    %1173 = vmatprep.subr.bf16.mxu0 %v228
    %1174 = vmatpush1.bf16.msra.mxu0 %v227
    %1175 = vmatprep.subr.bf16.mxu0 %v232
    %1176 = vmatpush1.bf16.msra.mxu0 %v231
    %1177 = vmatprep.subr.bf16.mxu0 %v236
    %1178 = vmatpush1.bf16.msra.mxu0 %v235
    %1179 = vmatprep.subr.bf16.mxu0 %v240
    %1180 = vmatpush1.bf16.msra.mxu0 %v239
    %1181 = vmatprep.subr.bf16.mxu0 %v244
    %1182 = vmatpush1.bf16.msra.mxu0 %v243
    %1183 = vmatprep.subr.bf16.mxu0 %v248
    %1184 = vmatpush1.bf16.msra.mxu0 %v247
    %1185 = vmatprep.subr.bf16.mxu0 %v252
    %1186 = vmatpush1.bf16.msra.mxu0 %v251
    %1187 = vmatprep.subr.bf16.mxu0 %v256
    %1188 = vmatpush1.bf16.msra.mxu0 %v255
    %1189 = vmatprep.subr.bf16.mxu0 0
    %1190 = vmatpush1.bf16.msra.mxu0 0
    %1191 = vmatprep.subr.bf16.mxu0 0
    %1192 = vmatpush1.bf16.msra.mxu0 0
    %1193 = vmatprep.subr.bf16.mxu0 0
    %1194 = vmatpush1.bf16.msra.mxu0 0
    %1195 = vmatprep.subr.bf16.mxu0 0
    %1196 = vmatpush1.bf16.msra.mxu0 0
    %1197 = vmatprep.subr.bf16.mxu0 0
    %1198 = vmatpush1.bf16.msra.mxu0 0
    %1199 = vmatprep.subr.bf16.mxu0 0
    %1200 = vmatpush1.bf16.msra.mxu0 0
    %1201 = vmatprep.subr.bf16.mxu0 0
    %1202 = vmatpush1.bf16.msra.mxu0 0
    %1203 = vmatprep.subr.bf16.mxu0 0
    %1204 = vmatpush1.bf16.msra.mxu0 0
    %1205 = vmatprep.mubr.bf16.mxu0 0
    %1206 = vmatmul.mubr.bf16.gmra.mrb[0].mxu0 %v1131
    %v1207 = vpop.f32.mrb[0].mxu0
    %v1208 = vadd.f32 0.0, %v1207
    %v1209 = vpop.f32.mrb[0].mxu0
    %v1210 = vadd.f32 0.0, %v1209
    %v1211 = vpop.f32.mrb[0].mxu0
    %v1212 = vpop.f32.mrb[0].mxu0
    %1213 = vdwg.mxu0
    %v1214 = vadd.f32 %v1127, %v1167
    %v1215 = vadd.f32 %v1128, %v1169
    %v1216 = vadd.f32 %v1129, %v1208
    %v1217 = vadd.f32 %v1130, %v1210
    %v1218 = vtanh.pop %v1214
    %v1219 = vtanh.pop %v1215
    %v1220 = vtanh.pop %v1216
    %v1221 = vtanh.pop %v1217
    %v1222 = vadd.f32 %v1218, 1.0
    %v1223 = vmul.f32 %v1222, 0.5
    %v1224 = vadd.f32 %v1219, 1.0
    %v1225 = vmul.f32 %v1224, 0.5
    %v1226 = vadd.f32 %v1221, 1.0
    %v1227 = vmul.f32 %v1226, 0.5
    %v1228 = vmul.f32 %v1225, %v1123
    %v1229 = vmul.f32 %v1223, %v1220
    %v1230 = vadd.f32 %v1228, %v1229
    %v1231 = vtanh.pop %v1230
    %v1232 = vmul.f32 %v1227, %v1231
    %s1233 = scalar_lea.vmem [#allocation2], 224
    %v1234 = vld [vmem:[%s1233] sm:$0xff]
    %v1235 = vld [vmem:[%s1233 + $0x8] sm:$0xff]
    %v1236 = vld [vmem:[%s1233 + $0x10] sm:$0xff]
    %v1237 = vld [vmem:[%s1233 + $0x18] sm:$0xff]
    %v1238 = vpack.c.bf16 %v1232, %v1232
    %1239 = vmatprep.subr.bf16.mxu0 %v226
    %1240 = vmatpush1.bf16.msra.mxu0 %v225
    %1241 = vmatprep.subr.bf16.mxu0 %v230
    %1242 = vmatpush1.bf16.msra.mxu0 %v229
    %1243 = vmatprep.subr.bf16.mxu0 %v234
    %1244 = vmatpush1.bf16.msra.mxu0 %v233
    %1245 = vmatprep.subr.bf16.mxu0 %v238
    %1246 = vmatpush1.bf16.msra.mxu0 %v237
    %1247 = vmatprep.subr.bf16.mxu0 %v242
    %1248 = vmatpush1.bf16.msra.mxu0 %v241
    %1249 = vmatprep.subr.bf16.mxu0 %v246
    %1250 = vmatpush1.bf16.msra.mxu0 %v245
    %1251 = vmatprep.subr.bf16.mxu0 %v250
    %1252 = vmatpush1.bf16.msra.mxu0 %v249
    %1253 = vmatprep.subr.bf16.mxu0 %v254
    %1254 = vmatpush1.bf16.msra.mxu0 %v253
    %1255 = vmatprep.subr.bf16.mxu0 0
    %1256 = vmatpush1.bf16.msra.mxu0 0
    %1257 = vmatprep.subr.bf16.mxu0 0
    %1258 = vmatpush1.bf16.msra.mxu0 0
    %1259 = vmatprep.subr.bf16.mxu0 0
    %1260 = vmatpush1.bf16.msra.mxu0 0
    %1261 = vmatprep.subr.bf16.mxu0 0
    %1262 = vmatpush1.bf16.msra.mxu0 0
    %1263 = vmatprep.subr.bf16.mxu0 0
    %1264 = vmatpush1.bf16.msra.mxu0 0
    %1265 = vmatprep.subr.bf16.mxu0 0
    %1266 = vmatpush1.bf16.msra.mxu0 0
    %1267 = vmatprep.subr.bf16.mxu0 0
    %1268 = vmatpush1.bf16.msra.mxu0 0
    %1269 = vmatprep.subr.bf16.mxu0 0
    %1270 = vmatpush1.bf16.msra.mxu0 0
    %1271 = vmatprep.mubr.bf16.mxu0 0
    %1272 = vmatmul.mubr.bf16.gmra.mrb[0].mxu0 %v1238
    %v1273 = vpop.f32.mrb[0].mxu0
    %v1274 = vadd.f32 0.0, %v1273
    %v1275 = vpop.f32.mrb[0].mxu0
    %v1276 = vadd.f32 0.0, %v1275
    %v1277 = vpop.f32.mrb[0].mxu0
    %v1278 = vpop.f32.mrb[0].mxu0
    %1279 = vdwg.mxu0
    %1280 = vmatprep.subr.bf16.mxu0 %v228
    %1281 = vmatpush1.bf16.msra.mxu0 %v227
    %1282 = vmatprep.subr.bf16.mxu0 %v232
    %1283 = vmatpush1.bf16.msra.mxu0 %v231
    %1284 = vmatprep.subr.bf16.mxu0 %v236
    %1285 = vmatpush1.bf16.msra.mxu0 %v235
    %1286 = vmatprep.subr.bf16.mxu0 %v240
    %1287 = vmatpush1.bf16.msra.mxu0 %v239
    %1288 = vmatprep.subr.bf16.mxu0 %v244
    %1289 = vmatpush1.bf16.msra.mxu0 %v243
    %1290 = vmatprep.subr.bf16.mxu0 %v248
    %1291 = vmatpush1.bf16.msra.mxu0 %v247
    %1292 = vmatprep.subr.bf16.mxu0 %v252
    %1293 = vmatpush1.bf16.msra.mxu0 %v251
    %1294 = vmatprep.subr.bf16.mxu0 %v256
    %1295 = vmatpush1.bf16.msra.mxu0 %v255
    %1296 = vmatprep.subr.bf16.mxu0 0
    %1297 = vmatpush1.bf16.msra.mxu0 0
    %1298 = vmatprep.subr.bf16.mxu0 0
    %1299 = vmatpush1.bf16.msra.mxu0 0
    %1300 = vmatprep.subr.bf16.mxu0 0
    %1301 = vmatpush1.bf16.msra.mxu0 0
    %1302 = vmatprep.subr.bf16.mxu0 0
    %1303 = vmatpush1.bf16.msra.mxu0 0
    %1304 = vmatprep.subr.bf16.mxu0 0
    %1305 = vmatpush1.bf16.msra.mxu0 0
    %1306 = vmatprep.subr.bf16.mxu0 0
    %1307 = vmatpush1.bf16.msra.mxu0 0
    %1308 = vmatprep.subr.bf16.mxu0 0
    %1309 = vmatpush1.bf16.msra.mxu0 0
    %1310 = vmatprep.subr.bf16.mxu0 0
    %1311 = vmatpush1.bf16.msra.mxu0 0
    %1312 = vmatprep.mubr.bf16.mxu0 0
    %1313 = vmatmul.mubr.bf16.gmra.mrb[0].mxu0 %v1238
    %v1314 = vpop.f32.mrb[0].mxu0
    %v1315 = vadd.f32 0.0, %v1314
    %v1316 = vpop.f32.mrb[0].mxu0
    %v1317 = vadd.f32 0.0, %v1316
    %v1318 = vpop.f32.mrb[0].mxu0
    %v1319 = vpop.f32.mrb[0].mxu0
    %1320 = vdwg.mxu0
    %v1321 = vadd.f32 %v1234, %v1274
    %v1322 = vadd.f32 %v1235, %v1276
    %v1323 = vadd.f32 %v1236, %v1315
    %v1324 = vadd.f32 %v1237, %v1317
    %v1325 = vtanh.pop %v1321
    %v1326 = vtanh.pop %v1322
    %v1327 = vtanh.pop %v1323
    %v1328 = vtanh.pop %v1324
    %v1329 = vadd.f32 %v1325, 1.0
    %v1330 = vmul.f32 %v1329, 0.5
    %v1331 = vadd.f32 %v1326, 1.0
    %v1332 = vmul.f32 %v1331, 0.5
    %v1333 = vadd.f32 %v1328, 1.0
    %v1334 = vmul.f32 %v1333, 0.5
    %v1335 = vmul.f32 %v1332, %v1230
    %v1336 = vmul.f32 %v1330, %v1327
    %v1337 = vadd.f32 %v1335, %v1336
    %v1338 = vtanh.pop %v1337
    %v1339 = vmul.f32 %v1334, %v1338
    %v1340 = vld [vmem:[#allocation9] sm:$0xff]
    %v1341 = vld [vmem:[#allocation9 + $0x8] sm:$0xff]
    %v1342 = vld [vmem:[#allocation9 + $0x10] sm:$0xff]
    %v1343 = vld [vmem:[#allocation9 + $0x18] sm:$0xff]
    %v1344 = vld [vmem:[#allocation9 + $0x20] sm:$0xff]
    %v1345 = vld [vmem:[#allocation9 + $0x28] sm:$0xff]
    %v1346 = vld [vmem:[#allocation9 + $0x30] sm:$0xff]
    %v1347 = vld [vmem:[#allocation9 + $0x38] sm:$0xff]
    %v1348 = vld [vmem:[#allocation9 + $0x40] sm:$0xff]
    %v1349 = vld [vmem:[#allocation9 + $0x48] sm:$0xff]
    %v1350 = vld [vmem:[#allocation9 + $0x50] sm:$0xff]
    %v1351 = vld [vmem:[#allocation9 + $0x58] sm:$0xff]
    %v1352 = vld [vmem:[#allocation9 + $0x60] sm:$0xff]
    %v1353 = vld [vmem:[#allocation9 + $0x68] sm:$0xff]
    %v1354 = vld [vmem:[#allocation9 + $0x70] sm:$0xff]
    %v1355 = vld [vmem:[#allocation9 + $0x78] sm:$0xff]
    %v1356 = vld [vmem:[%s5] sm:$0x1]
    %v1358 = vlaneseq
    %v1359 = vshrl.u32 %v1358, 7
    %v1360 = vsub.s32 0, %v1359
    %v1361 = vrot.slane %v1356, %v1360
    %1363 = vmatprep.subr.mxu0 0.0
    %1364 = vmatpush1.msra.mxu0 %v1340
    %1365 = vmatprep.subr.mxu0 0.0
    %1366 = vmatpush1.msra.mxu0 %v1341
    %1367 = vmatprep.subr.mxu0 0.0
    %1368 = vmatpush1.msra.mxu0 %v1342
    %1369 = vmatprep.subr.mxu0 0.0
    %1370 = vmatpush1.msra.mxu0 %v1343
    %1371 = vmatprep.subr.mxu0 0.0
    %1372 = vmatpush1.msra.mxu0 %v1344
    %1373 = vmatprep.subr.mxu0 0.0
    %1374 = vmatpush1.msra.mxu0 %v1345
    %1375 = vmatprep.subr.mxu0 0.0
    %1376 = vmatpush1.msra.mxu0 %v1346
    %1377 = vmatprep.subr.mxu0 0.0
    %1378 = vmatpush1.msra.mxu0 %v1347
    %1379 = vmatprep.subr.mxu0 0.0
    %1380 = vmatpush1.msra.mxu0 %v1348
    %1381 = vmatprep.subr.mxu0 0.0
    %1382 = vmatpush1.msra.mxu0 %v1349
    %1383 = vmatprep.subr.mxu0 0.0
    %1384 = vmatpush1.msra.mxu0 %v1350
    %1385 = vmatprep.subr.mxu0 0.0
    %1386 = vmatpush1.msra.mxu0 %v1351
    %1387 = vmatprep.subr.mxu0 0.0
    %1388 = vmatpush1.msra.mxu0 %v1352
    %1389 = vmatprep.subr.mxu0 0.0
    %1390 = vmatpush1.msra.mxu0 %v1353
    %1391 = vmatprep.subr.mxu0 0.0
    %1392 = vmatpush1.msra.mxu0 %v1354
    %1393 = vmatprep.subr.mxu0 0.0
    %1394 = vmatpush1.msra.mxu0 %v1355
    %1395 = vmatprep.subr.mxu0 0.0
    %1396 = vmatpush1.msra.mxu0 0.0
    %1397 = vmatprep.subr.mxu0 0.0
    %1398 = vmatpush1.msra.mxu0 0.0
    %1399 = vmatprep.subr.mxu0 0.0
    %1400 = vmatpush1.msra.mxu0 0.0
    %1401 = vmatprep.subr.mxu0 0.0
    %1402 = vmatpush1.msra.mxu0 0.0
    %1403 = vmatprep.subr.mxu0 0.0
    %1404 = vmatpush1.msra.mxu0 0.0
    %1405 = vmatprep.subr.mxu0 0.0
    %1406 = vmatpush1.msra.mxu0 0.0
    %1407 = vmatprep.subr.mxu0 0.0
    %1408 = vmatpush1.msra.mxu0 0.0
    %1409 = vmatprep.subr.mxu0 0.0
    %1410 = vmatpush1.msra.mxu0 0.0
    %1411 = vmatprep.subr.mxu0 0.0
    %1412 = vmatpush1.msra.mxu0 0.0
    %1413 = vmatprep.subr.mxu0 0.0
    %1414 = vmatpush1.msra.mxu0 0.0
    %1415 = vmatprep.subr.mxu0 0.0
    %1416 = vmatpush1.msra.mxu0 0.0
    %1417 = vmatprep.subr.mxu0 0.0
    %1418 = vmatpush1.msra.mxu0 0.0
    %1419 = vmatprep.subr.mxu0 0.0
    %1420 = vmatpush1.msra.mxu0 0.0
    %1421 = vmatprep.subr.mxu0 0.0
    %1422 = vmatpush1.msra.mxu0 0.0
    %1423 = vmatprep.subr.mxu0 0.0
    %1424 = vmatpush1.msra.mxu0 0.0
    %1425 = vmatprep.subr.mxu0 0.0
    %1426 = vmatpush1.msra.mxu0 0.0
    %1427 = vmatprep.mubr.f32.mxu0 0.0
    %1428 = vmatmul.mubr.f32.gmra.mrb[0].mxu0 %v1339
    %v1429 = vpop.f32.mrb[0].mxu0
    %v1430 = vadd.f32 %v1361, %v1429
    %v1431 = vpop.f32.mrb[0].mxu0
    %1432 = vdwg.mxu0
    %1433 = vst [vmem:[#allocation11] sm:$0xff] %v1430
    // Predicated region
    $region42: #{tpu_custom_call.1} parent=1 // pred_check
      _
    $region43: #{tpu_custom_call.1} parent=1 // pred_check_branch
      %1435 = sbr.rel (0) target = $region45
    $region44: #{tpu_custom_call.1} parent=1 // pred_region
      %s1437 = ssub.s32 128, 128
      %1438 = vsyncadd [#allocation5], %s1437
      %s1440 = sshll.u32 [#allocation11], 4
      %s1441 = int_to_ptr.vmem [resolvable:$true] %s1440
      %1443 = dma.vmem_to_hbm [thread:$0]  %s1441, 128, %s6, [#allocation5]
    $region45: #{tpu_custom_call.1} parent=1 // pred_fallthru
      _
    // Predicated region
    $region46: #{tpu_custom_call.1} parent=1 // pred_check
      _
    $region47: #{tpu_custom_call.1} parent=1 // pred_check_branch
      %1445 = sbr.rel (0) target = $region49
    $region48: #{tpu_custom_call.1} parent=1 // pred_region
      %1446 = dma.done [#allocation5], 128
    $region49: #{tpu_custom_call.1} parent=1 // pred_fallthru
      _
    %1447 = vsyncpa [#allocation4], 1
    %1448 = vsyncpa [#allocation7], 1
    %1449 = vsyncpa [#allocation10], 1
    %1450 = vsyncpa [#allocation5], 1

</llo_original>
